<compile_context>
chip_gen: v5e
topology: v5e:2x2
jax: 0.10.0
libtpu: 0.0.40
codegen_flags: <defaults>
</compile_context>

<pallas_src>
import jax
import jax.numpy as jnp
from jax.experimental import pallas as pl
from jax.experimental.pallas import tpu as pltpu


OCP = 128  # lane-dense padded channel / hidden width used by every kernel output


# ----------------------------------------------------------------------------
# Pallas kernels
# ----------------------------------------------------------------------------
def _conv_bias_relu_pool_kernel(p_ref, w_ref, b_ref, o_ref):
    """Fused (im2col) conv + bias + ReLU + 2x2/2 max-pool for ONE image.

    p_ref : (1, 4, PH*PW, K)  patches for the 4 positions of every pool window
    w_ref : (K, OCP)          conv weight matrix, out-channels padded to 128 lanes
    b_ref : (1, OCP)          bias (padded)
    o_ref : (1, PH*PW, OCP)   pooled activation (lane-dense store)
    """
    w = w_ref[...]
    acc = jnp.dot(p_ref[0, 0, :, :], w, preferred_element_type=jnp.float32)
    for v in range(1, 4):
        acc = jnp.maximum(
            acc, jnp.dot(p_ref[0, v, :, :], w, preferred_element_type=jnp.float32))
    # max over the pool window commutes with the monotonic bias-add + ReLU epilogue
    o_ref[0, :, :] = jnp.maximum(acc + b_ref[...], 0.0).astype(o_ref.dtype)


def _fc_stack_kernel(x_ref, w1_ref, b1_ref, w2_ref, b2_ref, w3_ref, b3_ref, o_ref):
    """fc1 -> ReLU -> fc2 -> ReLU -> fc3 for one M-tile; intermediates stay on-chip."""
    h = jnp.dot(x_ref[...], w1_ref[...], preferred_element_type=jnp.float32)
    h = jnp.maximum(h + b1_ref[...], 0.0)
    h = jnp.dot(h, w2_ref[...], preferred_element_type=jnp.float32)
    h = jnp.maximum(h + b2_ref[...], 0.0)
    h = jnp.dot(h, w3_ref[...], preferred_element_type=jnp.float32)
    o_ref[...] = (h + b3_ref[...]).astype(o_ref.dtype)


# ----------------------------------------------------------------------------
# Kernel wrappers
# ----------------------------------------------------------------------------
def conv_bias_relu_pool(patches4, wmat, bias):
    """patches4: (B, 4, PH*PW, K) -> pooled activation (B, PH*PW, OCP)."""
    B, _, PHW, K = patches4.shape
    return pl.pallas_call(
        _conv_bias_relu_pool_kernel,
        out_shape=jax.ShapeDtypeStruct((B, PHW, OCP), patches4.dtype),
        grid=(B,),
        in_specs=[
            pl.BlockSpec((1, 4, PHW, K), lambda i: (i, 0, 0, 0)),
            pl.BlockSpec((K, OCP), lambda i: (0, 0)),   # weights resident across grid
            pl.BlockSpec((1, OCP), lambda i: (0, 0)),
        ],
        out_specs=pl.BlockSpec((1, PHW, OCP), lambda i: (i, 0, 0)),
        compiler_params=pltpu.CompilerParams(dimension_semantics=("parallel",)),
    )(patches4, wmat, bias)


def fc_stack(x, w1, b1, w2, b2, w3, b3):
    """(B, 1600) -> (B, OCP): fused 3-layer MLP, tiled over M (batch rows)."""
    B, K = x.shape
    TM = B if B <= 512 else 512   # bounded VMEM at any batch (safe on v7x 64 MiB)
    return pl.pallas_call(
        _fc_stack_kernel,
        out_shape=jax.ShapeDtypeStruct((B, OCP), x.dtype),
        grid=(pl.cdiv(B, TM),),
        in_specs=[
            pl.BlockSpec((TM, K), lambda i: (i, 0)),
            pl.BlockSpec(w1.shape, lambda i: (0, 0)),   # weights/bias resident
            pl.BlockSpec((1, OCP), lambda i: (0, 0)),
            pl.BlockSpec(w2.shape, lambda i: (0, 0)),
            pl.BlockSpec((1, OCP), lambda i: (0, 0)),
            pl.BlockSpec(w3.shape, lambda i: (0, 0)),
            pl.BlockSpec((1, OCP), lambda i: (0, 0)),
        ],
        out_specs=pl.BlockSpec((TM, OCP), lambda i: (i, 0)),
        compiler_params=pltpu.CompilerParams(dimension_semantics=("parallel",)),
    )(x, w1, b1, w2, b2, w3, b3)


# ----------------------------------------------------------------------------
# Glue: im2col restricted to the conv pixels that survive the 2x2 pool,
# grouped by pool-window corner (plain JAX; tiny tensors at these shapes).
# ----------------------------------------------------------------------------
def im2col_pool4(x, kh, kw):
    """x: (B, H, W, C) NHWC -> (B, 4, PH*PW, C*kh*kw), plus (PH, PW).

    Column order matches PyTorch conv-weight flattening: c*(kh*kw) + i*kw + j.
    Corner v of the second axis holds the patches of conv pixel (2*ph+a, 2*pw+b).
    """
    B, H, W, C = x.shape
    OH, OW = H - kh + 1, W - kw + 1
    PH, PW = OH // 2, OW // 2
    taps = [x[:, i:i + OH, j:j + OW, :] for i in range(kh) for j in range(kw)]
    p = jnp.stack(taps, axis=-1)                       # (B, OH, OW, C, kh*kw)
    p = p.reshape(B, OH, OW, C * kh * kw)              # col = c*kh*kw + i*kw + j
    corners = [p[:, a:2 * PH:2, b:2 * PW:2, :] for a in range(2) for b in range(2)]
    p4 = jnp.stack(corners, axis=1)                    # (B, 4, PH, PW, K)
    return p4.reshape(B, 4, PH * PW, C * kh * kw), PH, PW


# ----------------------------------------------------------------------------
# Parameters (PyTorch-style uniform(-1/sqrt(fan_in), 1/sqrt(fan_in)))
# ----------------------------------------------------------------------------
def init_params(key):
    def uni(k, shape, fan_in):
        bound = 1.0 / jnp.sqrt(jnp.float32(fan_in))
        return jax.random.uniform(k, shape, jnp.float32, -bound, bound)

    ks = jax.random.split(key, 10)
    return {
        "conv1_w": uni(ks[0], (16, 1, 3, 3), 1 * 3 * 3),
        "conv1_b": uni(ks[1], (16,), 1 * 3 * 3),
        "conv2_w": uni(ks[2], (64, 16, 3, 3), 16 * 3 * 3),
        "conv2_b": uni(ks[3], (64,), 16 * 3 * 3),
        "fc1_w": uni(ks[4], (120, 5 * 5 * 64), 5 * 5 * 64),
        "fc1_b": uni(ks[5], (120,), 5 * 5 * 64),
        "fc2_w": uni(ks[6], (84, 120), 120),
        "fc2_b": uni(ks[7], (84,), 120),
        "fc3_w": uni(ks[8], (10, 84), 84),
        "fc3_b": uni(ks[9], (10,), 84),
    }


def prepare_params(p):
    """One-time weight massaging (pre-transpose / re-order / pad), done at init.

    - conv weights -> (K, OCP) matmul form, output channels zero-padded to 128.
    - fc weights   -> (K, N) form (no .T per forward), N zero-padded to 128.
      fc1's contraction dim is re-ordered from torch's (c*25 + s) flattening to
      the kernel's (s*64 + c) layout, so no activation transpose is needed.
    """
    def pad2(a, rows, cols):
        return jnp.pad(a, ((0, rows - a.shape[0]), (0, cols - a.shape[1])))

    def padb(a):
        return jnp.pad(a, (0, OCP - a.shape[0])).reshape(1, OCP)

    fc1_km = p["fc1_w"].reshape(120, 64, 25).transpose(2, 1, 0).reshape(1600, 120)
    return {
        "conv1_w": pad2(p["conv1_w"].reshape(16, 9).T, 9, OCP),       # (9, 128)
        "conv1_b": padb(p["conv1_b"]),
        "conv2_w": pad2(p["conv2_w"].reshape(64, 144).T, 144, OCP),   # (144, 128)
        "conv2_b": padb(p["conv2_b"]),
        "fc1_w": pad2(fc1_km, 1600, OCP),       "fc1_b": padb(p["fc1_b"]),
        "fc2_w": pad2(p["fc2_w"].T, OCP, OCP),  "fc2_b": padb(p["fc2_b"]),
        "fc3_w": pad2(p["fc3_w"].T, OCP, OCP),  "fc3_b": padb(p["fc3_b"]),
    }


# ----------------------------------------------------------------------------
# Forward pass (mirrors CNN.forward)
# ----------------------------------------------------------------------------
def cnn_forward(pp, x_nchw):
    B = x_nchw.shape[0]
    # single layout conversion at the model boundary; everything below stays in
    # NHWC / (spatial, channel) layout, so no NCHW<->NHWC transposes between kernels.
    x = jnp.transpose(x_nchw, (0, 2, 3, 1))                        # (B, 28, 28, 1)

    p4, PH, PW = im2col_pool4(x, 3, 3)                             # (B, 4, 169, 9)
    y = conv_bias_relu_pool(p4, pp["conv1_w"], pp["conv1_b"])      # (B, 169, 128)

    x = y.reshape(B, PH, PW, OCP)[..., :16]                        # (B, 13, 13, 16)
    p4, PH, PW = im2col_pool4(x, 3, 3)                             # (B, 4, 25, 144)
    y = conv_bias_relu_pool(p4, pp["conv2_w"], pp["conv2_b"])      # (B, 25, 128)

    # flatten as (spatial, channel); fc1_w was re-ordered at init to match, so
    # this is equivalent to torch's x.view(-1, 5*5*64) feeding fc1.
    x = y[:, :, :64].reshape(B, 25 * 64)                           # (B, 1600)
    out = fc_stack(x, pp["fc1_w"], pp["fc1_b"], pp["fc2_w"], pp["fc2_b"],
                   pp["fc3_w"], pp["fc3_b"])                       # (B, 128)
    return out[:, :10]


# ----------------------------------------------------------------------------
# Pure-JAX reference (for a numerical sanity check)
# ----------------------------------------------------------------------------
def reference_forward(params, x):
    hp = jax.lax.Precision.HIGHEST

    def conv(x, w, b):
        y = jax.lax.conv_general_dilated(
            x, w, (1, 1), "VALID",
            dimension_numbers=("NCHW", "OIHW", "NCHW"), precision=hp)
        return jax.nn.relu(y + b[None, :, None, None])

    def pool(x):
        return jax.lax.reduce_window(x, -jnp.inf, jax.lax.max,
                                     (1, 1, 2, 2), (1, 1, 2, 2), "VALID")

    x = pool(conv(x, params["conv1_w"], params["conv1_b"]))
    x = pool(conv(x, params["conv2_w"], params["conv2_b"]))
    x = x.reshape(x.shape[0], -1)
    x = jax.nn.relu(jnp.dot(x, params["fc1_w"].T, precision=hp) + params["fc1_b"])
    x = jax.nn.relu(jnp.dot(x, params["fc2_w"].T, precision=hp) + params["fc2_b"])
    return jnp.dot(x, params["fc3_w"].T, precision=hp) + params["fc3_b"]


if __name__ == "__main__":
    key = jax.random.PRNGKey(0)
    pkey, xkey = jax.random.split(key)
    params = init_params(pkey)
    prepared = prepare_params(params)
    # MNIST-like input implied by the module (flatten to 5*5*64 requires 28x28).
    x = jax.random.normal(xkey, (2, 1, 28, 28), jnp.float32)

    out = jax.block_until_ready(jax.jit(cnn_forward)(prepared, x))
    assert out.shape == (2, 10) and out.dtype == jnp.float32

    ref = jax.block_until_ready(jax.jit(reference_forward)(params, x))
    err = float(jnp.max(jnp.abs(out - ref)))
    assert err < 1e-2, f"mismatch vs reference: max abs err = {err}"
    print("KERNEL_OK")
</pallas_src>

<mosaic_0001>
module attributes {stable_mosaic.version = 11 : i64} {
  func.func @_conv_bias_relu_pool_kernel(%arg0: i32, %arg1: memref<1x4x169x9xf32, #tpu.memory_space<vmem>>, %arg2: memref<9x128xf32, #tpu.memory_space<vmem>>, %arg3: memref<1x128xf32, #tpu.memory_space<vmem>>, %arg4: memref<1x169x128xf32, #tpu.memory_space<vmem>>) attributes {dimension_semantics = [#tpu.dimension_semantics<parallel>], iteration_bounds = array<i64: 2>, scalar_prefetch = 0 : i64, scratch_operands = 0 : i64, tpu.core_type = #tpu.core_type<tc>, window_params = [{transform_indices = @transform_0, window_bounds = array<i64: 1, 4, 169, 9>}, {pipeline_mode = #tpu.pipeline_mode<synchronous>, transform_indices = @transform_1, window_bounds = array<i64: 9, 128>}, {pipeline_mode = #tpu.pipeline_mode<synchronous>, transform_indices = @transform_2, window_bounds = array<i64: 1, 128>}, {transform_indices = @transform_3, window_bounds = array<i64: 1, 169, 128>}]} {
    %c0 = arith.constant 0 : index
    %c0_0 = arith.constant 0 : index
    %0 = vector.load %arg2[%c0, %c0_0] : memref<9x128xf32, #tpu.memory_space<vmem>>, vector<9x128xf32>
    %c0_1 = arith.constant 0 : index
    %c0_2 = arith.constant 0 : index
    %c0_3 = arith.constant 0 : index
    %c0_4 = arith.constant 0 : index
    %1 = vector.load %arg1[%c0_1, %c0_2, %c0_3, %c0_4] : memref<1x4x169x9xf32, #tpu.memory_space<vmem>>, vector<1x1x169x9xf32>
    %2 = vector.shape_cast %1 : vector<1x1x169x9xf32> to vector<169x9xf32>
    %cst = arith.constant dense<0.000000e+00> : vector<169x128xf32>
    %3 = tpu.matmul %2, %0, %cst {dimension_numbers = #tpu.dot_dimension_numbers<[1], [0], [0], [1], [0, 0, 1, 1], [], []>} : vector<169x9xf32>, vector<9x128xf32>, vector<169x128xf32> -> vector<169x128xf32>
    %c0_5 = arith.constant 0 : index
    %c1 = arith.constant 1 : index
    %c0_6 = arith.constant 0 : index
    %c0_7 = arith.constant 0 : index
    %4 = vector.load %arg1[%c0_5, %c1, %c0_6, %c0_7] : memref<1x4x169x9xf32, #tpu.memory_space<vmem>>, vector<1x1x169x9xf32>
    %5 = vector.shape_cast %4 : vector<1x1x169x9xf32> to vector<169x9xf32>
    %cst_8 = arith.constant dense<0.000000e+00> : vector<169x128xf32>
    %6 = tpu.matmul %5, %0, %cst_8 {dimension_numbers = #tpu.dot_dimension_numbers<[1], [0], [0], [1], [0, 0, 1, 1], [], []>} : vector<169x9xf32>, vector<9x128xf32>, vector<169x128xf32> -> vector<169x128xf32>
    %7 = arith.maximumf %3, %6 : vector<169x128xf32>
    %c0_9 = arith.constant 0 : index
    %c2 = arith.constant 2 : index
    %c0_10 = arith.constant 0 : index
    %c0_11 = arith.constant 0 : index
    %8 = vector.load %arg1[%c0_9, %c2, %c0_10, %c0_11] : memref<1x4x169x9xf32, #tpu.memory_space<vmem>>, vector<1x1x169x9xf32>
    %9 = vector.shape_cast %8 : vector<1x1x169x9xf32> to vector<169x9xf32>
    %cst_12 = arith.constant dense<0.000000e+00> : vector<169x128xf32>
    %10 = tpu.matmul %9, %0, %cst_12 {dimension_numbers = #tpu.dot_dimension_numbers<[1], [0], [0], [1], [0, 0, 1, 1], [], []>} : vector<169x9xf32>, vector<9x128xf32>, vector<169x128xf32> -> vector<169x128xf32>
    %11 = arith.maximumf %7, %10 : vector<169x128xf32>
    %c0_13 = arith.constant 0 : index
    %c3 = arith.constant 3 : index
    %c0_14 = arith.constant 0 : index
    %c0_15 = arith.constant 0 : index
    %12 = vector.load %arg1[%c0_13, %c3, %c0_14, %c0_15] : memref<1x4x169x9xf32, #tpu.memory_space<vmem>>, vector<1x1x169x9xf32>
    %13 = vector.shape_cast %12 : vector<1x1x169x9xf32> to vector<169x9xf32>
    %cst_16 = arith.constant dense<0.000000e+00> : vector<169x128xf32>
    %14 = tpu.matmul %13, %0, %cst_16 {dimension_numbers = #tpu.dot_dimension_numbers<[1], [0], [0], [1], [0, 0, 1, 1], [], []>} : vector<169x9xf32>, vector<9x128xf32>, vector<169x128xf32> -> vector<169x128xf32>
    %15 = arith.maximumf %11, %14 : vector<169x128xf32>
    %c0_17 = arith.constant 0 : index
    %c0_18 = arith.constant 0 : index
    %16 = vector.load %arg3[%c0_17, %c0_18] : memref<1x128xf32, #tpu.memory_space<vmem>>, vector<1x128xf32>
    %17 = vector.broadcast %16 : vector<1x128xf32> to vector<169x128xf32>
    %18 = arith.addf %15, %17 : vector<169x128xf32>
    %cst_19 = arith.constant 0.000000e+00 : f32
    %19 = vector.broadcast %cst_19 : f32 to vector<169x128xf32>
    %20 = arith.maximumf %18, %19 : vector<169x128xf32>
    %c0_20 = arith.constant 0 : index
    %c0_21 = arith.constant 0 : index
    %c0_22 = arith.constant 0 : index
    %21 = vector.load %arg4[%c0_20, %c0_21, %c0_22] : memref<1x169x128xf32, #tpu.memory_space<vmem>>, vector<1x169x128xf32>
    %22 = vector.shape_cast %21 : vector<1x169x128xf32> to vector<169x128xf32>
    %23 = vector.shape_cast %20 : vector<169x128xf32> to vector<1x169x128xf32>
    tpu.vector_store %arg4[%c0_20, %c0_21, %c0_22], %23 {strides = array<i32>} : memref<1x169x128xf32, #tpu.memory_space<vmem>>, vector<1x169x128xf32>,
    return
  }
  func.func @transform_0(%arg0: i32) -> (i32, i32, i32, i32) {
    %c0_i32 = arith.constant 0 : i32
    %c0_i32_0 = arith.constant 0 : i32
    %c0_i32_1 = arith.constant 0 : i32
    %c0_i32_2 = arith.constant 0 : i32
    return %arg0, %c0_i32, %c0_i32_0, %c0_i32_1 : i32, i32, i32, i32
  }
  func.func @transform_1(%arg0: i32) -> (i32, i32) {
    %c0_i32 = arith.constant 0 : i32
    %c0_i32_0 = arith.constant 0 : i32
    %c0_i32_1 = arith.constant 0 : i32
    return %c0_i32, %c0_i32_0 : i32, i32
  }
  func.func @transform_2(%arg0: i32) -> (i32, i32) {
    %c0_i32 = arith.constant 0 : i32
    %c0_i32_0 = arith.constant 0 : i32
    %c0_i32_1 = arith.constant 0 : i32
    return %c0_i32, %c0_i32_0 : i32, i32
  }
  func.func @transform_3(%arg0: i32) -> (i32, i32, i32) {
    %c0_i32 = arith.constant 0 : i32
    %c0_i32_0 = arith.constant 0 : i32
    %c0_i32_1 = arith.constant 0 : i32
    return %arg0, %c0_i32, %c0_i32_0 : i32, i32, i32
  }
}

module attributes {stable_mosaic.version = 11 : i64} {
  func.func @_conv_bias_relu_pool_kernel(%arg0: i32, %arg1: memref<1x4x25x144xf32, #tpu.memory_space<vmem>>, %arg2: memref<144x128xf32, #tpu.memory_space<vmem>>, %arg3: memref<1x128xf32, #tpu.memory_space<vmem>>, %arg4: memref<1x25x128xf32, #tpu.memory_space<vmem>>) attributes {dimension_semantics = [#tpu.dimension_semantics<parallel>], iteration_bounds = array<i64: 2>, scalar_prefetch = 0 : i64, scratch_operands = 0 : i64, tpu.core_type = #tpu.core_type<tc>, window_params = [{transform_indices = @transform_0, window_bounds = array<i64: 1, 4, 25, 144>}, {pipeline_mode = #tpu.pipeline_mode<synchronous>, transform_indices = @transform_1, window_bounds = array<i64: 144, 128>}, {pipeline_mode = #tpu.pipeline_mode<synchronous>, transform_indices = @transform_2, window_bounds = array<i64: 1, 128>}, {transform_indices = @transform_3, window_bounds = array<i64: 1, 25, 128>}]} {
    %c0 = arith.constant 0 : index
    %c0_0 = arith.constant 0 : index
    %0 = vector.load %arg2[%c0, %c0_0] : memref<144x128xf32, #tpu.memory_space<vmem>>, vector<144x128xf32>
    %c0_1 = arith.constant 0 : index
    %c0_2 = arith.constant 0 : index
    %c0_3 = arith.constant 0 : index
    %c0_4 = arith.constant 0 : index
    %1 = vector.load %arg1[%c0_1, %c0_2, %c0_3, %c0_4] : memref<1x4x25x144xf32, #tpu.memory_space<vmem>>, vector<1x1x25x144xf32>
    %2 = vector.shape_cast %1 : vector<1x1x25x144xf32> to vector<25x144xf32>
    %cst = arith.constant dense<0.000000e+00> : vector<25x128xf32>
    %3 = tpu.matmul %2, %0, %cst {dimension_numbers = #tpu.dot_dimension_numbers<[1], [0], [0], [1], [0, 0, 1, 1], [], []>} : vector<25x144xf32>, vector<144x128xf32>, vector<25x128xf32> -> vector<25x128xf32>
    %c0_5 = arith.constant 0 : index
    %c1 = arith.constant 1 : index
    %c0_6 = arith.constant 0 : index
    %c0_7 = arith.constant 0 : index
    %4 = vector.load %arg1[%c0_5, %c1, %c0_6, %c0_7] : memref<1x4x25x144xf32, #tpu.memory_space<vmem>>, vector<1x1x25x144xf32>
    %5 = vector.shape_cast %4 : vector<1x1x25x144xf32> to vector<25x144xf32>
    %cst_8 = arith.constant dense<0.000000e+00> : vector<25x128xf32>
    %6 = tpu.matmul %5, %0, %cst_8 {dimension_numbers = #tpu.dot_dimension_numbers<[1], [0], [0], [1], [0, 0, 1, 1], [], []>} : vector<25x144xf32>, vector<144x128xf32>, vector<25x128xf32> -> vector<25x128xf32>
    %7 = arith.maximumf %3, %6 : vector<25x128xf32>
    %c0_9 = arith.constant 0 : index
    %c2 = arith.constant 2 : index
    %c0_10 = arith.constant 0 : index
    %c0_11 = arith.constant 0 : index
    %8 = vector.load %arg1[%c0_9, %c2, %c0_10, %c0_11] : memref<1x4x25x144xf32, #tpu.memory_space<vmem>>, vector<1x1x25x144xf32>
    %9 = vector.shape_cast %8 : vector<1x1x25x144xf32> to vector<25x144xf32>
    %cst_12 = arith.constant dense<0.000000e+00> : vector<25x128xf32>
    %10 = tpu.matmul %9, %0, %cst_12 {dimension_numbers = #tpu.dot_dimension_numbers<[1], [0], [0], [1], [0, 0, 1, 1], [], []>} : vector<25x144xf32>, vector<144x128xf32>, vector<25x128xf32> -> vector<25x128xf32>
    %11 = arith.maximumf %7, %10 : vector<25x128xf32>
    %c0_13 = arith.constant 0 : index
    %c3 = arith.constant 3 : index
    %c0_14 = arith.constant 0 : index
    %c0_15 = arith.constant 0 : index
    %12 = vector.load %arg1[%c0_13, %c3, %c0_14, %c0_15] : memref<1x4x25x144xf32, #tpu.memory_space<vmem>>, vector<1x1x25x144xf32>
    %13 = vector.shape_cast %12 : vector<1x1x25x144xf32> to vector<25x144xf32>
    %cst_16 = arith.constant dense<0.000000e+00> : vector<25x128xf32>
    %14 = tpu.matmul %13, %0, %cst_16 {dimension_numbers = #tpu.dot_dimension_numbers<[1], [0], [0], [1], [0, 0, 1, 1], [], []>} : vector<25x144xf32>, vector<144x128xf32>, vector<25x128xf32> -> vector<25x128xf32>
    %15 = arith.maximumf %11, %14 : vector<25x128xf32>
    %c0_17 = arith.constant 0 : index
    %c0_18 = arith.constant 0 : index
    %16 = vector.load %arg3[%c0_17, %c0_18] : memref<1x128xf32, #tpu.memory_space<vmem>>, vector<1x128xf32>
    %17 = vector.broadcast %16 : vector<1x128xf32> to vector<25x128xf32>
    %18 = arith.addf %15, %17 : vector<25x128xf32>
    %cst_19 = arith.constant 0.000000e+00 : f32
    %19 = vector.broadcast %cst_19 : f32 to vector<25x128xf32>
    %20 = arith.maximumf %18, %19 : vector<25x128xf32>
    %c0_20 = arith.constant 0 : index
    %c0_21 = arith.constant 0 : index
    %c0_22 = arith.constant 0 : index
    %21 = vector.load %arg4[%c0_20, %c0_21, %c0_22] : memref<1x25x128xf32, #tpu.memory_space<vmem>>, vector<1x25x128xf32>
    %22 = vector.shape_cast %21 : vector<1x25x128xf32> to vector<25x128xf32>
    %23 = vector.shape_cast %20 : vector<25x128xf32> to vector<1x25x128xf32>
    tpu.vector_store %arg4[%c0_20, %c0_21, %c0_22], %23 {strides = array<i32>} : memref<1x25x128xf32, #tpu.memory_space<vmem>>, vector<1x25x128xf32>,
    return
  }
  func.func @transform_0(%arg0: i32) -> (i32, i32, i32, i32) {
    %c0_i32 = arith.constant 0 : i32
    %c0_i32_0 = arith.constant 0 : i32
    %c0_i32_1 = arith.constant 0 : i32
    %c0_i32_2 = arith.constant 0 : i32
    return %arg0, %c0_i32, %c0_i32_0, %c0_i32_1 : i32, i32, i32, i32
  }
  func.func @transform_1(%arg0: i32) -> (i32, i32) {
    %c0_i32 = arith.constant 0 : i32
    %c0_i32_0 = arith.constant 0 : i32
    %c0_i32_1 = arith.constant 0 : i32
    return %c0_i32, %c0_i32_0 : i32, i32
  }
  func.func @transform_2(%arg0: i32) -> (i32, i32) {
    %c0_i32 = arith.constant 0 : i32
    %c0_i32_0 = arith.constant 0 : i32
    %c0_i32_1 = arith.constant 0 : i32
    return %c0_i32, %c0_i32_0 : i32, i32
  }
  func.func @transform_3(%arg0: i32) -> (i32, i32, i32) {
    %c0_i32 = arith.constant 0 : i32
    %c0_i32_0 = arith.constant 0 : i32
    %c0_i32_1 = arith.constant 0 : i32
    return %arg0, %c0_i32, %c0_i32_0 : i32, i32, i32
  }
}

module attributes {stable_mosaic.version = 11 : i64} {
  func.func @_fc_stack_kernel(%arg0: i32, %arg1: memref<2x1600xf32, #tpu.memory_space<vmem>>, %arg2: memref<1600x128xf32, #tpu.memory_space<vmem>>, %arg3: memref<1x128xf32, #tpu.memory_space<vmem>>, %arg4: memref<128x128xf32, #tpu.memory_space<vmem>>, %arg5: memref<1x128xf32, #tpu.memory_space<vmem>>, %arg6: memref<128x128xf32, #tpu.memory_space<vmem>>, %arg7: memref<1x128xf32, #tpu.memory_space<vmem>>, %arg8: memref<2x128xf32, #tpu.memory_space<vmem>>) attributes {dimension_semantics = [#tpu.dimension_semantics<parallel>], iteration_bounds = array<i64: 1>, scalar_prefetch = 0 : i64, scratch_operands = 0 : i64, tpu.core_type = #tpu.core_type<tc>, window_params = [{transform_indices = @transform_0, window_bounds = array<i64: 2, 1600>}, {pipeline_mode = #tpu.pipeline_mode<synchronous>, transform_indices = @transform_1, window_bounds = array<i64: 1600, 128>}, {pipeline_mode = #tpu.pipeline_mode<synchronous>, transform_indices = @transform_2, window_bounds = array<i64: 1, 128>}, {pipeline_mode = #tpu.pipeline_mode<synchronous>, transform_indices = @transform_3, window_bounds = array<i64: 128, 128>}, {pipeline_mode = #tpu.pipeline_mode<synchronous>, transform_indices = @transform_4, window_bounds = array<i64: 1, 128>}, {pipeline_mode = #tpu.pipeline_mode<synchronous>, transform_indices = @transform_5, window_bounds = array<i64: 128, 128>}, {pipeline_mode = #tpu.pipeline_mode<synchronous>, transform_indices = @transform_6, window_bounds = array<i64: 1, 128>}, {transform_indices = @transform_7, window_bounds = array<i64: 2, 128>}]} {
    %c0 = arith.constant 0 : index
    %c0_0 = arith.constant 0 : index
    %0 = vector.load %arg1[%c0, %c0_0] : memref<2x1600xf32, #tpu.memory_space<vmem>>, vector<2x1600xf32>
    %c0_1 = arith.constant 0 : index
    %c0_2 = arith.constant 0 : index
    %1 = vector.load %arg2[%c0_1, %c0_2] : memref<1600x128xf32, #tpu.memory_space<vmem>>, vector<1600x128xf32>
    %cst = arith.constant dense<0.000000e+00> : vector<2x128xf32>
    %2 = tpu.matmul %0, %1, %cst {dimension_numbers = #tpu.dot_dimension_numbers<[1], [0], [0], [1], [0, 0, 1, 1], [], []>} : vector<2x1600xf32>, vector<1600x128xf32>, vector<2x128xf32> -> vector<2x128xf32>
    %c0_3 = arith.constant 0 : index
    %c0_4 = arith.constant 0 : index
    %3 = vector.load %arg3[%c0_3, %c0_4] : memref<1x128xf32, #tpu.memory_space<vmem>>, vector<1x128xf32>
    %4 = vector.broadcast %3 : vector<1x128xf32> to vector<2x128xf32>
    %5 = arith.addf %2, %4 : vector<2x128xf32>
    %cst_5 = arith.constant 0.000000e+00 : f32
    %6 = vector.broadcast %cst_5 : f32 to vector<2x128xf32>
    %7 = arith.maximumf %5, %6 : vector<2x128xf32>
    %c0_6 = arith.constant 0 : index
    %c0_7 = arith.constant 0 : index
    %8 = vector.load %arg4[%c0_6, %c0_7] : memref<128x128xf32, #tpu.memory_space<vmem>>, vector<128x128xf32>
    %cst_8 = arith.constant dense<0.000000e+00> : vector<2x128xf32>
    %9 = tpu.matmul %7, %8, %cst_8 {dimension_numbers = #tpu.dot_dimension_numbers<[1], [0], [0], [1], [0, 0, 1, 1], [], []>} : vector<2x128xf32>, vector<128x128xf32>, vector<2x128xf32> -> vector<2x128xf32>
    %c0_9 = arith.constant 0 : index
    %c0_10 = arith.constant 0 : index
    %10 = vector.load %arg5[%c0_9, %c0_10] : memref<1x128xf32, #tpu.memory_space<vmem>>, vector<1x128xf32>
    %11 = vector.broadcast %10 : vector<1x128xf32> to vector<2x128xf32>
    %12 = arith.addf %9, %11 : vector<2x128xf32>
    %cst_11 = arith.constant 0.000000e+00 : f32
    %13 = vector.broadcast %cst_11 : f32 to vector<2x128xf32>
    %14 = arith.maximumf %12, %13 : vector<2x128xf32>
    %c0_12 = arith.constant 0 : index
    %c0_13 = arith.constant 0 : index
    %15 = vector.load %arg6[%c0_12, %c0_13] : memref<128x128xf32, #tpu.memory_space<vmem>>, vector<128x128xf32>
    %cst_14 = arith.constant dense<0.000000e+00> : vector<2x128xf32>
    %16 = tpu.matmul %14, %15, %cst_14 {dimension_numbers = #tpu.dot_dimension_numbers<[1], [0], [0], [1], [0, 0, 1, 1], [], []>} : vector<2x128xf32>, vector<128x128xf32>, vector<2x128xf32> -> vector<2x128xf32>
    %c0_15 = arith.constant 0 : index
    %c0_16 = arith.constant 0 : index
    %17 = vector.load %arg7[%c0_15, %c0_16] : memref<1x128xf32, #tpu.memory_space<vmem>>, vector<1x128xf32>
    %18 = vector.broadcast %17 : vector<1x128xf32> to vector<2x128xf32>
    %19 = arith.addf %16, %18 : vector<2x128xf32>
    %c0_17 = arith.constant 0 : index
    %c0_18 = arith.constant 0 : index
    %20 = vector.load %arg8[%c0_17, %c0_18] : memref<2x128xf32, #tpu.memory_space<vmem>>, vector<2x128xf32>
    tpu.vector_store %arg8[%c0_17, %c0_18], %19 {strides = array<i32>} : memref<2x128xf32, #tpu.memory_space<vmem>>, vector<2x128xf32>,
    return
  }
  func.func @transform_0(%arg0: i32) -> (i32, i32) {
    %c0_i32 = arith.constant 0 : i32
    %c0_i32_0 = arith.constant 0 : i32
    return %arg0, %c0_i32 : i32, i32
  }
  func.func @transform_1(%arg0: i32) -> (i32, i32) {
    %c0_i32 = arith.constant 0 : i32
    %c0_i32_0 = arith.constant 0 : i32
    %c0_i32_1 = arith.constant 0 : i32
    return %c0_i32, %c0_i32_0 : i32, i32
  }
  func.func @transform_2(%arg0: i32) -> (i32, i32) {
    %c0_i32 = arith.constant 0 : i32
    %c0_i32_0 = arith.constant 0 : i32
    %c0_i32_1 = arith.constant 0 : i32
    return %c0_i32, %c0_i32_0 : i32, i32
  }
  func.func @transform_3(%arg0: i32) -> (i32, i32) {
    %c0_i32 = arith.constant 0 : i32
    %c0_i32_0 = arith.constant 0 : i32
    %c0_i32_1 = arith.constant 0 : i32
    return %c0_i32, %c0_i32_0 : i32, i32
  }
  func.func @transform_4(%arg0: i32) -> (i32, i32) {
    %c0_i32 = arith.constant 0 : i32
    %c0_i32_0 = arith.constant 0 : i32
    %c0_i32_1 = arith.constant 0 : i32
    return %c0_i32, %c0_i32_0 : i32, i32
  }
  func.func @transform_5(%arg0: i32) -> (i32, i32) {
    %c0_i32 = arith.constant 0 : i32
    %c0_i32_0 = arith.constant 0 : i32
    %c0_i32_1 = arith.constant 0 : i32
    return %c0_i32, %c0_i32_0 : i32, i32
  }
  func.func @transform_6(%arg0: i32) -> (i32, i32) {
    %c0_i32 = arith.constant 0 : i32
    %c0_i32_0 = arith.constant 0 : i32
    %c0_i32_1 = arith.constant 0 : i32
    return %c0_i32, %c0_i32_0 : i32, i32
  }
  func.func @transform_7(%arg0: i32) -> (i32, i32) {
    %c0_i32 = arith.constant 0 : i32
    %c0_i32_0 = arith.constant 0 : i32
    return %arg0, %c0_i32 : i32, i32
  }
}

</mosaic_0001>

<llo_original>
// kernel: cnn_forward.3
$region0: #{cnn_forward.3}
  #allocation0 [shape = 'u32[]', space=smem, size = 0x4, offset = 0x4, fixed_abs, tag = 'smem constant byte address 0x4 - core index']
  #allocation1 [shape = 'u32[72,128]{1,0:T(1,128)}', space=vmem, size = 0x9000, scoped, tag = 'internal scratch']
  %s0 = inlined_call_operand.vmem [shape: f32[2,4,169,9], index: 0, kind: input, shape index: {}]
  %s1 = inlined_call_operand.vmem [shape: f32[9,128], index: 1, kind: input, shape index: {}]
  %s2 = inlined_call_operand.vmem [shape: f32[1,128], index: 2, kind: input, shape index: {}]
  %s3 = inlined_call_operand.vmem [shape: f32[2,169,128], index: 3, kind: output, shape index: {}]
  %s4 = sld [smem:[#allocation0]]
  $region45: #{cnn_forward.3} parent=0
    _
  %s6 = ssub.s32 1, %s4
  %s7 = scalar_select 0, %s6, %s4
  loop: start=0, step=1, limit=4
  $region2: #{cnn_forward.3} parent=0 // loop_pre_header
    _
  $region3: #{cnn_forward.3} parent=0 // loop_header
    %s9 = sphi 0, %s13
    %p10 = scmp.ge.s32.totalorder %s9, 4
    %s19 = sphi 0, %s21
    %s22 = sphi 0, %s19
    %s23 = sphi 0, %s22
    %s39 = sphi 0, %s23
    %s43 = sphi 0, %s43
    %s45 = sphi 0, %s43
    %s46 = sphi 0, %s45
    %s60 = sphi 0, %s46
    %s64 = sphi 0, %s64
    %s66 = sphi 0, %s64
    %s67 = sphi 0, %s66
    %s81 = sphi 0, %s67
    %s87 = sphi 0, %s89
    %s90 = sphi 0, %s87
    %s91 = sphi 0, %s90
    %s107 = sphi 0, %s91
  $region4: #{cnn_forward.3} parent=0 // loop_header_branch
    %12 = sbr.rel (%p10) target = $region8
  $region5: #{cnn_forward.3} parent=0 // loop_body
    %s14 = ssub.s32 %s9, 1
    %s15 = ssub.s32 %s9, 2
    %s16 = sadd.s32 %s9, 1
    %s17 = ssub.s32 %s9, %s16
    %p18 = scmp.eq.s32.totalorder %s17, 0
    %s20 = sadd.s32 %s19, 1
    %s21 = scalar_select %p18, %s19, %s20
    %p24 = pneg %p18
    %p25 = scmp.eq.s32.totalorder %s9, 1
    %p26 = por %p24, %p25
    %p27 = scmp.ne.s32.totalorder %s19, %s22
    %p28 = scmp.eq.s32.totalorder %s9, 0
    %p29 = por %p27, %p28
    %p30 = scmp.ne.s32.totalorder %s19, %s22
    %p31 = scmp.eq.s32.totalorder %s14, 1
    %p32 = por %p30, %p31
    %p33 = scmp.ne.s32.totalorder %s22, %s23
    %p34 = scmp.eq.s32.totalorder %s14, 0
    %p35 = por %p33, %p34
    %p36 = scmp.ne.s32.totalorder %s22, %s23
    %p37 = scmp.eq.s32.totalorder %s15, 1
    %p38 = por %p36, %p37
    %p40 = scmp.ne.s32.totalorder %s23, %s39
    %p41 = scmp.eq.s32.totalorder %s15, 0
    %p42 = por %p40, %p41
    %s44 = sadd.s32 %s43, 1
    %p47 = scmp.eq.s32.totalorder %s9, 1
    %p48 = scmp.ne.s32.totalorder %s43, %s45
    %p49 = scmp.eq.s32.totalorder %s9, 0
    %p50 = por %p48, %p49
    %p51 = scmp.ne.s32.totalorder %s43, %s45
    %p52 = scmp.eq.s32.totalorder %s14, 1
    %p53 = por %p51, %p52
    %p54 = scmp.ne.s32.totalorder %s45, %s46
    %p55 = scmp.eq.s32.totalorder %s14, 0
    %p56 = por %p54, %p55
    %p57 = scmp.ne.s32.totalorder %s45, %s46
    %p58 = scmp.eq.s32.totalorder %s15, 1
    %p59 = por %p57, %p58
    %p61 = scmp.ne.s32.totalorder %s46, %s60
    %p62 = scmp.eq.s32.totalorder %s15, 0
    %p63 = por %p61, %p62
    %s65 = sadd.s32 %s64, 1
    %p68 = scmp.eq.s32.totalorder %s9, 1
    %p69 = scmp.ne.s32.totalorder %s64, %s66
    %p70 = scmp.eq.s32.totalorder %s9, 0
    %p71 = por %p69, %p70
    %p72 = scmp.ne.s32.totalorder %s64, %s66
    %p73 = scmp.eq.s32.totalorder %s14, 1
    %p74 = por %p72, %p73
    %p75 = scmp.ne.s32.totalorder %s66, %s67
    %p76 = scmp.eq.s32.totalorder %s14, 0
    %p77 = por %p75, %p76
    %p78 = scmp.ne.s32.totalorder %s66, %s67
    %p79 = scmp.eq.s32.totalorder %s15, 1
    %p80 = por %p78, %p79
    %p82 = scmp.ne.s32.totalorder %s67, %s81
    %p83 = scmp.eq.s32.totalorder %s15, 0
    %p84 = por %p82, %p83
    %s85 = ssub.s32 %s9, %s16
    %p86 = scmp.eq.s32.totalorder %s85, 0
    %s88 = sadd.s32 %s87, 1
    %s89 = scalar_select %p86, %s87, %s88
    %p92 = pneg %p86
    %p93 = scmp.eq.s32.totalorder %s9, 1
    %p94 = por %p92, %p93
    %p95 = scmp.ne.s32.totalorder %s87, %s90
    %p96 = scmp.eq.s32.totalorder %s9, 0
    %p97 = por %p95, %p96
    %p98 = scmp.ne.s32.totalorder %s87, %s90
    %p99 = scmp.eq.s32.totalorder %s14, 1
    %p100 = por %p98, %p99
    %p101 = scmp.ne.s32.totalorder %s90, %s91
    %p102 = scmp.eq.s32.totalorder %s14, 0
    %p103 = por %p101, %p102
    %p104 = scmp.ne.s32.totalorder %s90, %s91
    %p105 = scmp.eq.s32.totalorder %s15, 1
    %p106 = por %p104, %p105
    %p108 = scmp.ne.s32.totalorder %s91, %s107
    %p109 = scmp.eq.s32.totalorder %s15, 0
    %p110 = por %p108, %p109
    %p111 = scmp.le.s32.totalorder 1, %s9
    %p112 = scmp.lt.s32.totalorder %s9, 3
    %p113 = pnand %p111, %p112
    %p114 = pneg %p113
    // Predicated region
    $region9: #{cnn_forward.3} parent=5 // pred_check
      _
    $region10: #{cnn_forward.3} parent=5 // pred_check_branch
      %116 = sbr.rel (%p113) target = $region12
    $region11: #{cnn_forward.3} parent=5 // pred_region
      %s117 = ssub.s32 %s9, 1
      // Predicated region
      $region13: #{cnn_forward.3} parent=11 // pred_check
        %p118 = pneg %p56
      $region14: #{cnn_forward.3} parent=11 // pred_check_branch
        %120 = sbr.rel (%p118) target = $region16
      $region15: #{cnn_forward.3} parent=11 // pred_region
        _
      $region16: #{cnn_forward.3} parent=11 // pred_fallthru
        _
      // Predicated region
      $region17: #{cnn_forward.3} parent=11 // pred_check
        %p121 = pneg %p77
      $region18: #{cnn_forward.3} parent=11 // pred_check_branch
        %123 = sbr.rel (%p121) target = $region20
      $region19: #{cnn_forward.3} parent=11 // pred_region
        _
      $region20: #{cnn_forward.3} parent=11 // pred_fallthru
        _
    $region12: #{cnn_forward.3} parent=5 // pred_fallthru
      _
    %p124 = scmp.lt.s32.totalorder %s9, 2
    // Predicated region
    $region21: #{cnn_forward.3} parent=5 // pred_check
      %p125 = pneg %p124
    $region22: #{cnn_forward.3} parent=5 // pred_check_branch
      %127 = sbr.rel (%p125) target = $region24
    $region23: #{cnn_forward.3} parent=5 // pred_region
      // Predicated region
      $region25: #{cnn_forward.3} parent=23 // pred_check
        %p128 = pneg %p29
      $region26: #{cnn_forward.3} parent=23 // pred_check_branch
        %130 = sbr.rel (%p128) target = $region28
      $region27: #{cnn_forward.3} parent=23 // pred_region
        %p131 = scmp.lt.s32.totalorder %s9, 1
        %s132 = scalar_select %p131, %s9, 1
        %s133 = smul.addr %s132, 88
        %s134 = smul.addr %s133, 8
        %s135 = scalar_lea.vmem %s0, %s134
      $region28: #{cnn_forward.3} parent=23 // pred_fallthru
        _
    $region24: #{cnn_forward.3} parent=5 // pred_fallthru
      _
    %p136 = scmp.le.s32.totalorder 1, %s9
    %p137 = scmp.lt.s32.totalorder %s9, 3
    %p138 = pnand %p136, %p137
    %p139 = pneg %p138
    // Predicated region
    $region29: #{cnn_forward.3} parent=5 // pred_check
      _
    $region30: #{cnn_forward.3} parent=5 // pred_check_branch
      %141 = sbr.rel (%p138) target = $region32
    $region31: #{cnn_forward.3} parent=5 // pred_region
      %s142 = ssub.s32 %s9, 1
      %p143 = scmp.lt.s32.totalorder %s14, 1
      %s144 = scalar_select %p143, %s14, 1
      %s145 = smul.addr %s144, 88
      %s146 = smul.addr %s145, 8
      %s147 = scalar_lea.vmem %s0, %s146
      %p148 = pneg %p35
      %p149 = pneg %p32
      %p150 = pneg %p56
      %p151 = pneg %p53
      %p152 = pneg %p77
      %p153 = pneg %p74
      %p154 = pneg %p103
      %p155 = pneg %p100
      %p156 = scmp.lt.s32.totalorder %s14, 1
      %s157 = scalar_select %p156, %s14, 1
      %s158 = smul.addr %s157, 22
      %s159 = smul.addr %s158, 8
      %s160 = scalar_lea.vmem %s3, %s159
      %p161 = scmp.lt.s32.totalorder %s14, 1
      %s162 = scalar_select %p161, %s14, 1
      %s163 = smul.addr %s162, 88
      %s164 = smul.addr %s163, 8
      %s165 = scalar_lea.vmem %s0, %s164
      %p166 = scmp.lt.s32.totalorder %s14, 1
      %s167 = scalar_select %p166, %s14, 1
      %s168 = smul.addr %s167, 22
      %s169 = smul.addr %s168, 8
      %s170 = scalar_lea.vmem %s3, %s169
      %v171 = vld [vmem:[%s1] sm:$0xff]
      %v172 = vld [vmem:[%s1 + $0x8] sm:$0x1]
      %v173 = vld [vmem:[%s165] sm:$0xff]
      %v174 = vld [vmem:[%s165 + $0x8] sm:$0xff]
      %v175 = vld [vmem:[%s165 + $0x10] sm:$0xff]
      %v176 = vld [vmem:[%s165 + $0x18] sm:$0xff]
      %v177 = vld [vmem:[%s165 + $0x20] sm:$0xff]
      %v178 = vld [vmem:[%s165 + $0x28] sm:$0xff]
      %v179 = vld [vmem:[%s165 + $0x30] sm:$0xff]
      %v180 = vld [vmem:[%s165 + $0x38] sm:$0xff]
      %v181 = vld [vmem:[%s165 + $0x40] sm:$0xff]
      %v182 = vld [vmem:[%s165 + $0x48] sm:$0xff]
      %v183 = vld [vmem:[%s165 + $0x50] sm:$0xff]
      %v184 = vld [vmem:[%s165 + $0x58] sm:$0xff]
      %v185 = vld [vmem:[%s165 + $0x60] sm:$0xff]
      %v186 = vld [vmem:[%s165 + $0x68] sm:$0xff]
      %v187 = vld [vmem:[%s165 + $0x70] sm:$0xff]
      %v188 = vld [vmem:[%s165 + $0x78] sm:$0xff]
      %v189 = vld [vmem:[%s165 + $0x80] sm:$0xff]
      %v190 = vld [vmem:[%s165 + $0x88] sm:$0xff]
      %v191 = vld [vmem:[%s165 + $0x90] sm:$0xff]
      %v192 = vld [vmem:[%s165 + $0x98] sm:$0xff]
      %v193 = vld [vmem:[%s165 + $0xa0] sm:$0xff]
      %v194 = vld [vmem:[%s165 + $0xa8] sm:$0x1]
      %vm195 = vcmask 72704
      %v197 = vsel %vm195, %v173, 0
      %v200 = vsel %vm195, %v174, 0
      %v203 = vsel %vm195, %v175, 0
      %v206 = vsel %vm195, %v176, 0
      %v209 = vsel %vm195, %v177, 0
      %v212 = vsel %vm195, %v178, 0
      %v215 = vsel %vm195, %v179, 0
      %v218 = vsel %vm195, %v180, 0
      %v221 = vsel %vm195, %v181, 0
      %v224 = vsel %vm195, %v182, 0
      %v227 = vsel %vm195, %v183, 0
      %v230 = vsel %vm195, %v184, 0
      %v233 = vsel %vm195, %v185, 0
      %v236 = vsel %vm195, %v186, 0
      %v239 = vsel %vm195, %v187, 0
      %v242 = vsel %vm195, %v188, 0
      %v245 = vsel %vm195, %v189, 0
      %v248 = vsel %vm195, %v190, 0
      %v251 = vsel %vm195, %v191, 0
      %v254 = vsel %vm195, %v192, 0
      %v257 = vsel %vm195, %v193, 0
      %v260 = vsel %vm195, %v194, 0
      %vm262 = vcmask 1040384
      %v264 = vsel %vm262, %v172, 0
      %266 = vmatpush.msra.mxu0 0.0
      %267 = vmatpush.msra.mxu0 0.0
      %268 = vmatpush.msra.mxu0 0.0
      %269 = vmatpush.msra.mxu0 0.0
      %270 = vmatpush.msra.mxu0 0.0
      %271 = vmatpush.msra.mxu0 0.0
      %272 = vmatpush.msra.mxu0 0.0
      %273 = vmatpush.msra.mxu0 0.0
      %274 = vmatpush.msra.mxu0 0.0
      %275 = vmatpush.msra.mxu0 0.0
      %276 = vmatpush.msra.mxu0 0.0
      %277 = vmatpush.msra.mxu0 0.0
      %278 = vmatpush.msra.mxu0 0.0
      %279 = vmatpush.msra.mxu0 0.0
      %280 = vmatpush.msra.mxu0 %v264
      %281 = vmatpush.msra.mxu0 %v171
      %282 = vmatmul.f32.gmra.mxu0 %v197
      %v283 = vpop.f32.mrf.mxu0
      %v284 = vadd.f32 0.0, %v283
      %285 = vmatmul.f32.gmra.mxu0 %v200
      %v286 = vpop.f32.mrf.mxu0
      %v287 = vadd.f32 0.0, %v286
      %288 = vmatmul.f32.gmra.mxu0 %v203
      %v289 = vpop.f32.mrf.mxu0
      %v290 = vadd.f32 0.0, %v289
      %291 = vmatmul.f32.gmra.mxu0 %v206
      %v292 = vpop.f32.mrf.mxu0
      %v293 = vadd.f32 0.0, %v292
      %294 = vmatmul.f32.gmra.mxu0 %v209
      %v295 = vpop.f32.mrf.mxu0
      %v296 = vadd.f32 0.0, %v295
      %297 = vmatmul.f32.gmra.mxu0 %v212
      %v298 = vpop.f32.mrf.mxu0
      %v299 = vadd.f32 0.0, %v298
      %300 = vmatmul.f32.gmra.mxu0 %v215
      %v301 = vpop.f32.mrf.mxu0
      %v302 = vadd.f32 0.0, %v301
      %303 = vmatmul.f32.gmra.mxu0 %v218
      %v304 = vpop.f32.mrf.mxu0
      %v305 = vadd.f32 0.0, %v304
      %306 = vmatmul.f32.gmra.mxu0 %v221
      %v307 = vpop.f32.mrf.mxu0
      %v308 = vadd.f32 0.0, %v307
      %309 = vmatmul.f32.gmra.mxu0 %v224
      %v310 = vpop.f32.mrf.mxu0
      %v311 = vadd.f32 0.0, %v310
      %312 = vmatmul.f32.gmra.mxu0 %v227
      %v313 = vpop.f32.mrf.mxu0
      %v314 = vadd.f32 0.0, %v313
      %315 = vmatmul.f32.gmra.mxu0 %v230
      %v316 = vpop.f32.mrf.mxu0
      %v317 = vadd.f32 0.0, %v316
      %318 = vmatmul.f32.gmra.mxu0 %v233
      %v319 = vpop.f32.mrf.mxu0
      %v320 = vadd.f32 0.0, %v319
      %321 = vmatmul.f32.gmra.mxu0 %v236
      %v322 = vpop.f32.mrf.mxu0
      %v323 = vadd.f32 0.0, %v322
      %324 = vmatmul.f32.gmra.mxu0 %v239
      %v325 = vpop.f32.mrf.mxu0
      %v326 = vadd.f32 0.0, %v325
      %327 = vmatmul.f32.gmra.mxu0 %v242
      %v328 = vpop.f32.mrf.mxu0
      %v329 = vadd.f32 0.0, %v328
      %330 = vmatmul.f32.gmra.mxu0 %v245
      %v331 = vpop.f32.mrf.mxu0
      %v332 = vadd.f32 0.0, %v331
      %333 = vmatmul.f32.gmra.mxu0 %v248
      %v334 = vpop.f32.mrf.mxu0
      %v335 = vadd.f32 0.0, %v334
      %336 = vmatmul.f32.gmra.mxu0 %v251
      %v337 = vpop.f32.mrf.mxu0
      %v338 = vadd.f32 0.0, %v337
      %339 = vmatmul.f32.gmra.mxu0 %v254
      %v340 = vpop.f32.mrf.mxu0
      %v341 = vadd.f32 0.0, %v340
      %342 = vmatmul.f32.gmra.mxu0 %v257
      %v343 = vpop.f32.mrf.mxu0
      %v344 = vadd.f32 0.0, %v343
      %345 = vmatmul.f32.gmra.mxu0 %v260
      %v346 = vpop.f32.mrf.mxu0
      %v347 = vadd.f32 0.0, %v346
      %348 = vdwg.mxu0
      %s349 = scalar_lea.vmem %s165, 176
      %v350 = vld [vmem:[%s349] sm:$0xff]
      %v351 = vld [vmem:[%s349 + $0x8] sm:$0xff]
      %v352 = vld [vmem:[%s349 + $0x10] sm:$0xff]
      %v353 = vld [vmem:[%s349 + $0x18] sm:$0xff]
      %v354 = vld [vmem:[%s349 + $0x20] sm:$0xff]
      %v355 = vld [vmem:[%s349 + $0x28] sm:$0xff]
      %v356 = vld [vmem:[%s349 + $0x30] sm:$0xff]
      %v357 = vld [vmem:[%s349 + $0x38] sm:$0xff]
      %v358 = vld [vmem:[%s349 + $0x40] sm:$0xff]
      %v359 = vld [vmem:[%s349 + $0x48] sm:$0xff]
      %v360 = vld [vmem:[%s349 + $0x50] sm:$0xff]
      %v361 = vld [vmem:[%s349 + $0x58] sm:$0xff]
      %v362 = vld [vmem:[%s349 + $0x60] sm:$0xff]
      %v363 = vld [vmem:[%s349 + $0x68] sm:$0xff]
      %v364 = vld [vmem:[%s349 + $0x70] sm:$0xff]
      %v365 = vld [vmem:[%s349 + $0x78] sm:$0xff]
      %v366 = vld [vmem:[%s349 + $0x80] sm:$0xff]
      %v367 = vld [vmem:[%s349 + $0x88] sm:$0xff]
      %v368 = vld [vmem:[%s349 + $0x90] sm:$0xff]
      %v369 = vld [vmem:[%s349 + $0x98] sm:$0xff]
      %v370 = vld [vmem:[%s349 + $0xa0] sm:$0xff]
      %v371 = vld [vmem:[%s349 + $0xa8] sm:$0x1]
      %v373 = vsel %vm195, %v350, 0
      %v376 = vsel %vm195, %v351, 0
      %v379 = vsel %vm195, %v352, 0
      %v382 = vsel %vm195, %v353, 0
      %v385 = vsel %vm195, %v354, 0
      %v388 = vsel %vm195, %v355, 0
      %v391 = vsel %vm195, %v356, 0
      %v394 = vsel %vm195, %v357, 0
      %v397 = vsel %vm195, %v358, 0
      %v400 = vsel %vm195, %v359, 0
      %v403 = vsel %vm195, %v360, 0
      %v406 = vsel %vm195, %v361, 0
      %v409 = vsel %vm195, %v362, 0
      %v412 = vsel %vm195, %v363, 0
      %v415 = vsel %vm195, %v364, 0
      %v418 = vsel %vm195, %v365, 0
      %v421 = vsel %vm195, %v366, 0
      %v424 = vsel %vm195, %v367, 0
      %v427 = vsel %vm195, %v368, 0
      %v430 = vsel %vm195, %v369, 0
      %v433 = vsel %vm195, %v370, 0
      %v436 = vsel %vm195, %v371, 0
      %438 = vmatpush.msra.mxu0 0.0
      %439 = vmatpush.msra.mxu0 0.0
      %440 = vmatpush.msra.mxu0 0.0
      %441 = vmatpush.msra.mxu0 0.0
      %442 = vmatpush.msra.mxu0 0.0
      %443 = vmatpush.msra.mxu0 0.0
      %444 = vmatpush.msra.mxu0 0.0
      %445 = vmatpush.msra.mxu0 0.0
      %446 = vmatpush.msra.mxu0 0.0
      %447 = vmatpush.msra.mxu0 0.0
      %448 = vmatpush.msra.mxu0 0.0
      %449 = vmatpush.msra.mxu0 0.0
      %450 = vmatpush.msra.mxu0 0.0
      %451 = vmatpush.msra.mxu0 0.0
      %452 = vmatpush.msra.mxu0 %v264
      %453 = vmatpush.msra.mxu0 %v171
      %454 = vmatmul.f32.gmra.mxu0 %v373
      %v455 = vpop.f32.mrf.mxu0
      %v456 = vadd.f32 0.0, %v455
      %457 = vmatmul.f32.gmra.mxu0 %v376
      %v458 = vpop.f32.mrf.mxu0
      %v459 = vadd.f32 0.0, %v458
      %460 = vmatmul.f32.gmra.mxu0 %v379
      %v461 = vpop.f32.mrf.mxu0
      %v462 = vadd.f32 0.0, %v461
      %463 = vmatmul.f32.gmra.mxu0 %v382
      %v464 = vpop.f32.mrf.mxu0
      %v465 = vadd.f32 0.0, %v464
      %466 = vmatmul.f32.gmra.mxu0 %v385
      %v467 = vpop.f32.mrf.mxu0
      %v468 = vadd.f32 0.0, %v467
      %469 = vmatmul.f32.gmra.mxu0 %v388
      %v470 = vpop.f32.mrf.mxu0
      %v471 = vadd.f32 0.0, %v470
      %472 = vmatmul.f32.gmra.mxu0 %v391
      %v473 = vpop.f32.mrf.mxu0
      %v474 = vadd.f32 0.0, %v473
      %475 = vmatmul.f32.gmra.mxu0 %v394
      %v476 = vpop.f32.mrf.mxu0
      %v477 = vadd.f32 0.0, %v476
      %478 = vmatmul.f32.gmra.mxu0 %v397
      %v479 = vpop.f32.mrf.mxu0
      %v480 = vadd.f32 0.0, %v479
      %481 = vmatmul.f32.gmra.mxu0 %v400
      %v482 = vpop.f32.mrf.mxu0
      %v483 = vadd.f32 0.0, %v482
      %484 = vmatmul.f32.gmra.mxu0 %v403
      %v485 = vpop.f32.mrf.mxu0
      %v486 = vadd.f32 0.0, %v485
      %487 = vmatmul.f32.gmra.mxu0 %v406
      %v488 = vpop.f32.mrf.mxu0
      %v489 = vadd.f32 0.0, %v488
      %490 = vmatmul.f32.gmra.mxu0 %v409
      %v491 = vpop.f32.mrf.mxu0
      %v492 = vadd.f32 0.0, %v491
      %493 = vmatmul.f32.gmra.mxu0 %v412
      %v494 = vpop.f32.mrf.mxu0
      %v495 = vadd.f32 0.0, %v494
      %496 = vmatmul.f32.gmra.mxu0 %v415
      %v497 = vpop.f32.mrf.mxu0
      %v498 = vadd.f32 0.0, %v497
      %499 = vmatmul.f32.gmra.mxu0 %v418
      %v500 = vpop.f32.mrf.mxu0
      %v501 = vadd.f32 0.0, %v500
      %502 = vmatmul.f32.gmra.mxu0 %v421
      %v503 = vpop.f32.mrf.mxu0
      %v504 = vadd.f32 0.0, %v503
      %505 = vmatmul.f32.gmra.mxu0 %v424
      %v506 = vpop.f32.mrf.mxu0
      %v507 = vadd.f32 0.0, %v506
      %508 = vmatmul.f32.gmra.mxu0 %v427
      %v509 = vpop.f32.mrf.mxu0
      %v510 = vadd.f32 0.0, %v509
      %511 = vmatmul.f32.gmra.mxu0 %v430
      %v512 = vpop.f32.mrf.mxu0
      %v513 = vadd.f32 0.0, %v512
      %514 = vmatmul.f32.gmra.mxu0 %v433
      %v515 = vpop.f32.mrf.mxu0
      %v516 = vadd.f32 0.0, %v515
      %517 = vmatmul.f32.gmra.mxu0 %v436
      %v518 = vpop.f32.mrf.mxu0
      %v519 = vadd.f32 0.0, %v518
      %520 = vdwg.mxu0
      %v521 = vmax.f32 %v284, %v456
      %v522 = vmax.f32 %v287, %v459
      %v523 = vmax.f32 %v290, %v462
      %v524 = vmax.f32 %v293, %v465
      %v525 = vmax.f32 %v296, %v468
      %v526 = vmax.f32 %v299, %v471
      %v527 = vmax.f32 %v302, %v474
      %v528 = vmax.f32 %v305, %v477
      %v529 = vmax.f32 %v308, %v480
      %v530 = vmax.f32 %v311, %v483
      %v531 = vmax.f32 %v314, %v486
      %v532 = vmax.f32 %v317, %v489
      %v533 = vmax.f32 %v320, %v492
      %v534 = vmax.f32 %v323, %v495
      %v535 = vmax.f32 %v326, %v498
      %v536 = vmax.f32 %v329, %v501
      %v537 = vmax.f32 %v332, %v504
      %v538 = vmax.f32 %v335, %v507
      %v539 = vmax.f32 %v338, %v510
      %v540 = vmax.f32 %v341, %v513
      %v541 = vmax.f32 %v344, %v516
      %v542 = vmax.f32 %v347, %v519
      %s543 = scalar_lea.vmem %s165, 352
      %v544 = vld [vmem:[%s543] sm:$0xff]
      %v545 = vld [vmem:[%s543 + $0x8] sm:$0xff]
      %v546 = vld [vmem:[%s543 + $0x10] sm:$0xff]
      %v547 = vld [vmem:[%s543 + $0x18] sm:$0xff]
      %v548 = vld [vmem:[%s543 + $0x20] sm:$0xff]
      %v549 = vld [vmem:[%s543 + $0x28] sm:$0xff]
      %v550 = vld [vmem:[%s543 + $0x30] sm:$0xff]
      %v551 = vld [vmem:[%s543 + $0x38] sm:$0xff]
      %v552 = vld [vmem:[%s543 + $0x40] sm:$0xff]
      %v553 = vld [vmem:[%s543 + $0x48] sm:$0xff]
      %v554 = vld [vmem:[%s543 + $0x50] sm:$0xff]
      %v555 = vld [vmem:[%s543 + $0x58] sm:$0xff]
      %v556 = vld [vmem:[%s543 + $0x60] sm:$0xff]
      %v557 = vld [vmem:[%s543 + $0x68] sm:$0xff]
      %v558 = vld [vmem:[%s543 + $0x70] sm:$0xff]
      %v559 = vld [vmem:[%s543 + $0x78] sm:$0xff]
      %v560 = vld [vmem:[%s543 + $0x80] sm:$0xff]
      %v561 = vld [vmem:[%s543 + $0x88] sm:$0xff]
      %v562 = vld [vmem:[%s543 + $0x90] sm:$0xff]
      %v563 = vld [vmem:[%s543 + $0x98] sm:$0xff]
      %v564 = vld [vmem:[%s543 + $0xa0] sm:$0xff]
      %v565 = vld [vmem:[%s543 + $0xa8] sm:$0x1]
      %v567 = vsel %vm195, %v544, 0
      %v570 = vsel %vm195, %v545, 0
      %v573 = vsel %vm195, %v546, 0
      %v576 = vsel %vm195, %v547, 0
      %v579 = vsel %vm195, %v548, 0
      %v582 = vsel %vm195, %v549, 0
      %v585 = vsel %vm195, %v550, 0
      %v588 = vsel %vm195, %v551, 0
      %v591 = vsel %vm195, %v552, 0
      %v594 = vsel %vm195, %v553, 0
      %v597 = vsel %vm195, %v554, 0
      %v600 = vsel %vm195, %v555, 0
      %v603 = vsel %vm195, %v556, 0
      %v606 = vsel %vm195, %v557, 0
      %v609 = vsel %vm195, %v558, 0
      %v612 = vsel %vm195, %v559, 0
      %v615 = vsel %vm195, %v560, 0
      %v618 = vsel %vm195, %v561, 0
      %v621 = vsel %vm195, %v562, 0
      %v624 = vsel %vm195, %v563, 0
      %v627 = vsel %vm195, %v564, 0
      %v630 = vsel %vm195, %v565, 0
      %632 = vmatpush.msra.mxu0 0.0
      %633 = vmatpush.msra.mxu0 0.0
      %634 = vmatpush.msra.mxu0 0.0
      %635 = vmatpush.msra.mxu0 0.0
      %636 = vmatpush.msra.mxu0 0.0
      %637 = vmatpush.msra.mxu0 0.0
      %638 = vmatpush.msra.mxu0 0.0
      %639 = vmatpush.msra.mxu0 0.0
      %640 = vmatpush.msra.mxu0 0.0
      %641 = vmatpush.msra.mxu0 0.0
      %642 = vmatpush.msra.mxu0 0.0
      %643 = vmatpush.msra.mxu0 0.0
      %644 = vmatpush.msra.mxu0 0.0
      %645 = vmatpush.msra.mxu0 0.0
      %646 = vmatpush.msra.mxu0 %v264
      %647 = vmatpush.msra.mxu0 %v171
      %648 = vmatmul.f32.gmra.mxu0 %v567
      %v649 = vpop.f32.mrf.mxu0
      %v650 = vadd.f32 0.0, %v649
      %651 = vmatmul.f32.gmra.mxu0 %v570
      %v652 = vpop.f32.mrf.mxu0
      %v653 = vadd.f32 0.0, %v652
      %654 = vmatmul.f32.gmra.mxu0 %v573
      %v655 = vpop.f32.mrf.mxu0
      %v656 = vadd.f32 0.0, %v655
      %657 = vmatmul.f32.gmra.mxu0 %v576
      %v658 = vpop.f32.mrf.mxu0
      %v659 = vadd.f32 0.0, %v658
      %660 = vmatmul.f32.gmra.mxu0 %v579
      %v661 = vpop.f32.mrf.mxu0
      %v662 = vadd.f32 0.0, %v661
      %663 = vmatmul.f32.gmra.mxu0 %v582
      %v664 = vpop.f32.mrf.mxu0
      %v665 = vadd.f32 0.0, %v664
      %666 = vmatmul.f32.gmra.mxu0 %v585
      %v667 = vpop.f32.mrf.mxu0
      %v668 = vadd.f32 0.0, %v667
      %669 = vmatmul.f32.gmra.mxu0 %v588
      %v670 = vpop.f32.mrf.mxu0
      %v671 = vadd.f32 0.0, %v670
      %672 = vmatmul.f32.gmra.mxu0 %v591
      %v673 = vpop.f32.mrf.mxu0
      %v674 = vadd.f32 0.0, %v673
      %675 = vmatmul.f32.gmra.mxu0 %v594
      %v676 = vpop.f32.mrf.mxu0
      %v677 = vadd.f32 0.0, %v676
      %678 = vmatmul.f32.gmra.mxu0 %v597
      %v679 = vpop.f32.mrf.mxu0
      %v680 = vadd.f32 0.0, %v679
      %681 = vmatmul.f32.gmra.mxu0 %v600
      %v682 = vpop.f32.mrf.mxu0
      %v683 = vadd.f32 0.0, %v682
      %684 = vmatmul.f32.gmra.mxu0 %v603
      %v685 = vpop.f32.mrf.mxu0
      %v686 = vadd.f32 0.0, %v685
      %687 = vmatmul.f32.gmra.mxu0 %v606
      %v688 = vpop.f32.mrf.mxu0
      %v689 = vadd.f32 0.0, %v688
      %690 = vmatmul.f32.gmra.mxu0 %v609
      %v691 = vpop.f32.mrf.mxu0
      %v692 = vadd.f32 0.0, %v691
      %693 = vmatmul.f32.gmra.mxu0 %v612
      %v694 = vpop.f32.mrf.mxu0
      %v695 = vadd.f32 0.0, %v694
      %696 = vmatmul.f32.gmra.mxu0 %v615
      %v697 = vpop.f32.mrf.mxu0
      %v698 = vadd.f32 0.0, %v697
      %699 = vmatmul.f32.gmra.mxu0 %v618
      %v700 = vpop.f32.mrf.mxu0
      %v701 = vadd.f32 0.0, %v700
      %702 = vmatmul.f32.gmra.mxu0 %v621
      %v703 = vpop.f32.mrf.mxu0
      %v704 = vadd.f32 0.0, %v703
      %705 = vmatmul.f32.gmra.mxu0 %v624
      %v706 = vpop.f32.mrf.mxu0
      %v707 = vadd.f32 0.0, %v706
      %708 = vmatmul.f32.gmra.mxu0 %v627
      %v709 = vpop.f32.mrf.mxu0
      %v710 = vadd.f32 0.0, %v709
      %711 = vmatmul.f32.gmra.mxu0 %v630
      %v712 = vpop.f32.mrf.mxu0
      %v713 = vadd.f32 0.0, %v712
      %714 = vdwg.mxu0
      %v715 = vmax.f32 %v521, %v650
      %v716 = vmax.f32 %v522, %v653
      %v717 = vmax.f32 %v523, %v656
      %v718 = vmax.f32 %v524, %v659
      %v719 = vmax.f32 %v525, %v662
      %v720 = vmax.f32 %v526, %v665
      %v721 = vmax.f32 %v527, %v668
      %v722 = vmax.f32 %v528, %v671
      %v723 = vmax.f32 %v529, %v674
      %v724 = vmax.f32 %v530, %v677
      %v725 = vmax.f32 %v531, %v680
      %v726 = vmax.f32 %v532, %v683
      %v727 = vmax.f32 %v533, %v686
      %v728 = vmax.f32 %v534, %v689
      %v729 = vmax.f32 %v535, %v692
      %v730 = vmax.f32 %v536, %v695
      %v731 = vmax.f32 %v537, %v698
      %v732 = vmax.f32 %v538, %v701
      %v733 = vmax.f32 %v539, %v704
      %v734 = vmax.f32 %v540, %v707
      %v735 = vmax.f32 %v541, %v710
      %v736 = vmax.f32 %v542, %v713
      %s737 = scalar_lea.vmem %s165, 528
      %v738 = vld [vmem:[%s737] sm:$0xff]
      %v739 = vld [vmem:[%s737 + $0x8] sm:$0xff]
      %v740 = vld [vmem:[%s737 + $0x10] sm:$0xff]
      %v741 = vld [vmem:[%s737 + $0x18] sm:$0xff]
      %v742 = vld [vmem:[%s737 + $0x20] sm:$0xff]
      %v743 = vld [vmem:[%s737 + $0x28] sm:$0xff]
      %v744 = vld [vmem:[%s737 + $0x30] sm:$0xff]
      %v745 = vld [vmem:[%s737 + $0x38] sm:$0xff]
      %v746 = vld [vmem:[%s737 + $0x40] sm:$0xff]
      %v747 = vld [vmem:[%s737 + $0x48] sm:$0xff]
      %v748 = vld [vmem:[%s737 + $0x50] sm:$0xff]
      %v749 = vld [vmem:[%s737 + $0x58] sm:$0xff]
      %v750 = vld [vmem:[%s737 + $0x60] sm:$0xff]
      %v751 = vld [vmem:[%s737 + $0x68] sm:$0xff]
      %v752 = vld [vmem:[%s737 + $0x70] sm:$0xff]
      %v753 = vld [vmem:[%s737 + $0x78] sm:$0xff]
      %v754 = vld [vmem:[%s737 + $0x80] sm:$0xff]
      %v755 = vld [vmem:[%s737 + $0x88] sm:$0xff]
      %v756 = vld [vmem:[%s737 + $0x90] sm:$0xff]
      %v757 = vld [vmem:[%s737 + $0x98] sm:$0xff]
      %v758 = vld [vmem:[%s737 + $0xa0] sm:$0xff]
      %v759 = vld [vmem:[%s737 + $0xa8] sm:$0x1]
      %v761 = vsel %vm195, %v738, 0
      %v764 = vsel %vm195, %v739, 0
      %v767 = vsel %vm195, %v740, 0
      %v770 = vsel %vm195, %v741, 0
      %v773 = vsel %vm195, %v742, 0
      %v776 = vsel %vm195, %v743, 0
      %v779 = vsel %vm195, %v744, 0
      %v782 = vsel %vm195, %v745, 0
      %v785 = vsel %vm195, %v746, 0
      %v788 = vsel %vm195, %v747, 0
      %v791 = vsel %vm195, %v748, 0
      %v794 = vsel %vm195, %v749, 0
      %v797 = vsel %vm195, %v750, 0
      %v800 = vsel %vm195, %v751, 0
      %v803 = vsel %vm195, %v752, 0
      %v806 = vsel %vm195, %v753, 0
      %v809 = vsel %vm195, %v754, 0
      %v812 = vsel %vm195, %v755, 0
      %v815 = vsel %vm195, %v756, 0
      %v818 = vsel %vm195, %v757, 0
      %v821 = vsel %vm195, %v758, 0
      %v824 = vsel %vm195, %v759, 0
      %826 = vmatpush.msra.mxu0 0.0
      %827 = vmatpush.msra.mxu0 0.0
      %828 = vmatpush.msra.mxu0 0.0
      %829 = vmatpush.msra.mxu0 0.0
      %830 = vmatpush.msra.mxu0 0.0
      %831 = vmatpush.msra.mxu0 0.0
      %832 = vmatpush.msra.mxu0 0.0
      %833 = vmatpush.msra.mxu0 0.0
      %834 = vmatpush.msra.mxu0 0.0
      %835 = vmatpush.msra.mxu0 0.0
      %836 = vmatpush.msra.mxu0 0.0
      %837 = vmatpush.msra.mxu0 0.0
      %838 = vmatpush.msra.mxu0 0.0
      %839 = vmatpush.msra.mxu0 0.0
      %840 = vmatpush.msra.mxu0 %v264
      %841 = vmatpush.msra.mxu0 %v171
      %842 = vmatmul.f32.gmra.mxu0 %v761
      %v843 = vpop.f32.mrf.mxu0
      %v844 = vadd.f32 0.0, %v843
      %845 = vmatmul.f32.gmra.mxu0 %v764
      %v846 = vpop.f32.mrf.mxu0
      %v847 = vadd.f32 0.0, %v846
      %848 = vmatmul.f32.gmra.mxu0 %v767
      %v849 = vpop.f32.mrf.mxu0
      %v850 = vadd.f32 0.0, %v849
      %851 = vmatmul.f32.gmra.mxu0 %v770
      %v852 = vpop.f32.mrf.mxu0
      %v853 = vadd.f32 0.0, %v852
      %854 = vmatmul.f32.gmra.mxu0 %v773
      %v855 = vpop.f32.mrf.mxu0
      %v856 = vadd.f32 0.0, %v855
      %857 = vmatmul.f32.gmra.mxu0 %v776
      %v858 = vpop.f32.mrf.mxu0
      %v859 = vadd.f32 0.0, %v858
      %860 = vmatmul.f32.gmra.mxu0 %v779
      %v861 = vpop.f32.mrf.mxu0
      %v862 = vadd.f32 0.0, %v861
      %863 = vmatmul.f32.gmra.mxu0 %v782
      %v864 = vpop.f32.mrf.mxu0
      %v865 = vadd.f32 0.0, %v864
      %866 = vmatmul.f32.gmra.mxu0 %v785
      %v867 = vpop.f32.mrf.mxu0
      %v868 = vadd.f32 0.0, %v867
      %869 = vmatmul.f32.gmra.mxu0 %v788
      %v870 = vpop.f32.mrf.mxu0
      %v871 = vadd.f32 0.0, %v870
      %872 = vmatmul.f32.gmra.mxu0 %v791
      %v873 = vpop.f32.mrf.mxu0
      %v874 = vadd.f32 0.0, %v873
      %875 = vmatmul.f32.gmra.mxu0 %v794
      %v876 = vpop.f32.mrf.mxu0
      %v877 = vadd.f32 0.0, %v876
      %878 = vmatmul.f32.gmra.mxu0 %v797
      %v879 = vpop.f32.mrf.mxu0
      %v880 = vadd.f32 0.0, %v879
      %881 = vmatmul.f32.gmra.mxu0 %v800
      %v882 = vpop.f32.mrf.mxu0
      %v883 = vadd.f32 0.0, %v882
      %884 = vmatmul.f32.gmra.mxu0 %v803
      %v885 = vpop.f32.mrf.mxu0
      %v886 = vadd.f32 0.0, %v885
      %887 = vmatmul.f32.gmra.mxu0 %v806
      %v888 = vpop.f32.mrf.mxu0
      %v889 = vadd.f32 0.0, %v888
      %890 = vmatmul.f32.gmra.mxu0 %v809
      %v891 = vpop.f32.mrf.mxu0
      %v892 = vadd.f32 0.0, %v891
      %893 = vmatmul.f32.gmra.mxu0 %v812
      %v894 = vpop.f32.mrf.mxu0
      %v895 = vadd.f32 0.0, %v894
      %896 = vmatmul.f32.gmra.mxu0 %v815
      %v897 = vpop.f32.mrf.mxu0
      %v898 = vadd.f32 0.0, %v897
      %899 = vmatmul.f32.gmra.mxu0 %v818
      %v900 = vpop.f32.mrf.mxu0
      %v901 = vadd.f32 0.0, %v900
      %902 = vmatmul.f32.gmra.mxu0 %v821
      %v903 = vpop.f32.mrf.mxu0
      %v904 = vadd.f32 0.0, %v903
      %905 = vmatmul.f32.gmra.mxu0 %v824
      %v906 = vpop.f32.mrf.mxu0
      %v907 = vadd.f32 0.0, %v906
      %908 = vdwg.mxu0
      %v909 = vmax.f32 %v715, %v844
      %v910 = vmax.f32 %v716, %v847
      %v911 = vmax.f32 %v717, %v850
      %v912 = vmax.f32 %v718, %v853
      %v913 = vmax.f32 %v719, %v856
      %v914 = vmax.f32 %v720, %v859
      %v915 = vmax.f32 %v721, %v862
      %v916 = vmax.f32 %v722, %v865
      %v917 = vmax.f32 %v723, %v868
      %v918 = vmax.f32 %v724, %v871
      %v919 = vmax.f32 %v725, %v874
      %v920 = vmax.f32 %v726, %v877
      %v921 = vmax.f32 %v727, %v880
      %v922 = vmax.f32 %v728, %v883
      %v923 = vmax.f32 %v729, %v886
      %v924 = vmax.f32 %v730, %v889
      %v925 = vmax.f32 %v731, %v892
      %v926 = vmax.f32 %v732, %v895
      %v927 = vmax.f32 %v733, %v898
      %v928 = vmax.f32 %v734, %v901
      %v929 = vmax.f32 %v735, %v904
      %v930 = vmax.f32 %v736, %v907
      %v931 = vld [vmem:[%s2] sm:$0x1]
      %v933 = vperm.slane %v931, 0
      %v935 = vadd.f32 %v909, %v933
      %v936 = vadd.f32 %v910, %v933
      %v937 = vadd.f32 %v911, %v933
      %v938 = vadd.f32 %v912, %v933
      %v939 = vadd.f32 %v913, %v933
      %v940 = vadd.f32 %v914, %v933
      %v941 = vadd.f32 %v915, %v933
      %v942 = vadd.f32 %v916, %v933
      %v943 = vadd.f32 %v917, %v933
      %v944 = vadd.f32 %v918, %v933
      %v945 = vadd.f32 %v919, %v933
      %v946 = vadd.f32 %v920, %v933
      %v947 = vadd.f32 %v921, %v933
      %v948 = vadd.f32 %v922, %v933
      %v949 = vadd.f32 %v923, %v933
      %v950 = vadd.f32 %v924, %v933
      %v951 = vadd.f32 %v925, %v933
      %v952 = vadd.f32 %v926, %v933
      %v953 = vadd.f32 %v927, %v933
      %v954 = vadd.f32 %v928, %v933
      %v955 = vadd.f32 %v929, %v933
      %v956 = vadd.f32 %v930, %v933
      %v957 = vmax.f32 %v935, 0.0
      %v958 = vmax.f32 %v936, 0.0
      %v959 = vmax.f32 %v937, 0.0
      %v960 = vmax.f32 %v938, 0.0
      %v961 = vmax.f32 %v939, 0.0
      %v962 = vmax.f32 %v940, 0.0
      %v963 = vmax.f32 %v941, 0.0
      %v964 = vmax.f32 %v942, 0.0
      %v965 = vmax.f32 %v943, 0.0
      %v966 = vmax.f32 %v944, 0.0
      %v967 = vmax.f32 %v945, 0.0
      %v968 = vmax.f32 %v946, 0.0
      %v969 = vmax.f32 %v947, 0.0
      %v970 = vmax.f32 %v948, 0.0
      %v971 = vmax.f32 %v949, 0.0
      %v972 = vmax.f32 %v950, 0.0
      %v973 = vmax.f32 %v951, 0.0
      %v974 = vmax.f32 %v952, 0.0
      %v975 = vmax.f32 %v953, 0.0
      %v976 = vmax.f32 %v954, 0.0
      %v977 = vmax.f32 %v955, 0.0
      %v978 = vmax.f32 %v956, 0.0
      %979 = vst [vmem:[%s170] sm:$0xff] %v957
      %980 = vst [vmem:[%s170 + $0x8] sm:$0xff] %v958
      %981 = vst [vmem:[%s170 + $0x10] sm:$0xff] %v959
      %982 = vst [vmem:[%s170 + $0x18] sm:$0xff] %v960
      %983 = vst [vmem:[%s170 + $0x20] sm:$0xff] %v961
      %984 = vst [vmem:[%s170 + $0x28] sm:$0xff] %v962
      %985 = vst [vmem:[%s170 + $0x30] sm:$0xff] %v963
      %986 = vst [vmem:[%s170 + $0x38] sm:$0xff] %v964
      %987 = vst [vmem:[%s170 + $0x40] sm:$0xff] %v965
      %988 = vst [vmem:[%s170 + $0x48] sm:$0xff] %v966
      %989 = vst [vmem:[%s170 + $0x50] sm:$0xff] %v967
      %990 = vst [vmem:[%s170 + $0x58] sm:$0xff] %v968
      %991 = vst [vmem:[%s170 + $0x60] sm:$0xff] %v969
      %992 = vst [vmem:[%s170 + $0x68] sm:$0xff] %v970
      %993 = vst [vmem:[%s170 + $0x70] sm:$0xff] %v971
      %994 = vst [vmem:[%s170 + $0x78] sm:$0xff] %v972
      %995 = vst [vmem:[%s170 + $0x80] sm:$0xff] %v973
      %996 = vst [vmem:[%s170 + $0x88] sm:$0xff] %v974
      %997 = vst [vmem:[%s170 + $0x90] sm:$0xff] %v975
      %998 = vst [vmem:[%s170 + $0x98] sm:$0xff] %v976
      %999 = vst [vmem:[%s170 + $0xa0] sm:$0xff] %v977
      %1000 = vst [vmem:[%s170 + $0xa8] sm:$0x1] %v978
      %p1001 = scmp.lt.s32.totalorder %s14, 1
      %s1002 = scalar_select %p1001, %s14, 1
      %s1003 = smul.addr %s1002, 22
      %s1004 = smul.addr %s1003, 8
      %s1005 = scalar_lea.vmem %s3, %s1004
      // Predicated region
      $region33: #{cnn_forward.3} parent=31 // pred_check
        %p1006 = pneg %p100
      $region34: #{cnn_forward.3} parent=31 // pred_check_branch
        %1008 = sbr.rel (%p1006) target = $region36
      $region35: #{cnn_forward.3} parent=31 // pred_region
        _
      $region36: #{cnn_forward.3} parent=31 // pred_fallthru
        _
    $region32: #{cnn_forward.3} parent=5 // pred_fallthru
      _
    %p1009 = scmp.le.s32.totalorder 2, %s9
    // Predicated region
    $region37: #{cnn_forward.3} parent=5 // pred_check
      %p1010 = pneg %p1009
    $region38: #{cnn_forward.3} parent=5 // pred_check_branch
      %1012 = sbr.rel (%p1010) target = $region40
    $region39: #{cnn_forward.3} parent=5 // pred_region
      %s1013 = ssub.s32 %s9, 2
      // Predicated region
      $region41: #{cnn_forward.3} parent=39 // pred_check
        %p1014 = pneg %p106
      $region42: #{cnn_forward.3} parent=39 // pred_check_branch
        %1016 = sbr.rel (%p1014) target = $region44
      $region43: #{cnn_forward.3} parent=39 // pred_region
        %p1017 = scmp.lt.s32.totalorder %s15, 1
        %s1018 = scalar_select %p1017, %s15, 1
        %s1019 = smul.addr %s1018, 22
        %s1020 = smul.addr %s1019, 8
        %s1021 = scalar_lea.vmem %s3, %s1020
      $region44: #{cnn_forward.3} parent=39 // pred_fallthru
        _
    $region40: #{cnn_forward.3} parent=5 // pred_fallthru
      _
  $region6: #{cnn_forward.3} parent=0 // loop_footer
    %s13 = sadd.s32 1, %s9
  $region7: #{cnn_forward.3} parent=0 // loop_footer_branch
    %8 = sbr.rel target = $region3
  $region8: #{cnn_forward.3} parent=0 // loop_exit
    _

// kernel: cnn_forward.4
$region0: #{cnn_forward.4}
  #allocation0 [shape = 'u32[]', space=smem, size = 0x4, offset = 0x4, fixed_abs, tag = 'smem constant byte address 0x4 - core index']
  #allocation1 [shape = 'u32[72,128]{1,0:T(1,128)}', space=vmem, size = 0x9000, scoped, tag = 'internal scratch']
  %s0 = inlined_call_operand.vmem [shape: f32[2,4,25,144], index: 0, kind: input, shape index: {}]
  %s1 = inlined_call_operand.vmem [shape: f32[144,128], index: 1, kind: input, shape index: {}]
  %s2 = inlined_call_operand.vmem [shape: f32[1,128], index: 2, kind: input, shape index: {}]
  %s3 = inlined_call_operand.vmem [shape: f32[2,25,128], index: 3, kind: output, shape index: {}]
  %s4 = sld [smem:[#allocation0]]
  $region45: #{cnn_forward.4} parent=0
    _
  %s6 = ssub.s32 1, %s4
  %s7 = scalar_select 0, %s6, %s4
  loop: start=0, step=1, limit=4
  $region2: #{cnn_forward.4} parent=0 // loop_pre_header
    _
  $region3: #{cnn_forward.4} parent=0 // loop_header
    %s9 = sphi 0, %s13
    %p10 = scmp.ge.s32.totalorder %s9, 4
    %s19 = sphi 0, %s21
    %s22 = sphi 0, %s19
    %s23 = sphi 0, %s22
    %s39 = sphi 0, %s23
    %s43 = sphi 0, %s43
    %s45 = sphi 0, %s43
    %s46 = sphi 0, %s45
    %s60 = sphi 0, %s46
    %s64 = sphi 0, %s64
    %s66 = sphi 0, %s64
    %s67 = sphi 0, %s66
    %s81 = sphi 0, %s67
    %s87 = sphi 0, %s89
    %s90 = sphi 0, %s87
    %s91 = sphi 0, %s90
    %s107 = sphi 0, %s91
  $region4: #{cnn_forward.4} parent=0 // loop_header_branch
    %12 = sbr.rel (%p10) target = $region8
  $region5: #{cnn_forward.4} parent=0 // loop_body
    %s14 = ssub.s32 %s9, 1
    %s15 = ssub.s32 %s9, 2
    %s16 = sadd.s32 %s9, 1
    %s17 = ssub.s32 %s9, %s16
    %p18 = scmp.eq.s32.totalorder %s17, 0
    %s20 = sadd.s32 %s19, 1
    %s21 = scalar_select %p18, %s19, %s20
    %p24 = pneg %p18
    %p25 = scmp.eq.s32.totalorder %s9, 1
    %p26 = por %p24, %p25
    %p27 = scmp.ne.s32.totalorder %s19, %s22
    %p28 = scmp.eq.s32.totalorder %s9, 0
    %p29 = por %p27, %p28
    %p30 = scmp.ne.s32.totalorder %s19, %s22
    %p31 = scmp.eq.s32.totalorder %s14, 1
    %p32 = por %p30, %p31
    %p33 = scmp.ne.s32.totalorder %s22, %s23
    %p34 = scmp.eq.s32.totalorder %s14, 0
    %p35 = por %p33, %p34
    %p36 = scmp.ne.s32.totalorder %s22, %s23
    %p37 = scmp.eq.s32.totalorder %s15, 1
    %p38 = por %p36, %p37
    %p40 = scmp.ne.s32.totalorder %s23, %s39
    %p41 = scmp.eq.s32.totalorder %s15, 0
    %p42 = por %p40, %p41
    %s44 = sadd.s32 %s43, 1
    %p47 = scmp.eq.s32.totalorder %s9, 1
    %p48 = scmp.ne.s32.totalorder %s43, %s45
    %p49 = scmp.eq.s32.totalorder %s9, 0
    %p50 = por %p48, %p49
    %p51 = scmp.ne.s32.totalorder %s43, %s45
    %p52 = scmp.eq.s32.totalorder %s14, 1
    %p53 = por %p51, %p52
    %p54 = scmp.ne.s32.totalorder %s45, %s46
    %p55 = scmp.eq.s32.totalorder %s14, 0
    %p56 = por %p54, %p55
    %p57 = scmp.ne.s32.totalorder %s45, %s46
    %p58 = scmp.eq.s32.totalorder %s15, 1
    %p59 = por %p57, %p58
    %p61 = scmp.ne.s32.totalorder %s46, %s60
    %p62 = scmp.eq.s32.totalorder %s15, 0
    %p63 = por %p61, %p62
    %s65 = sadd.s32 %s64, 1
    %p68 = scmp.eq.s32.totalorder %s9, 1
    %p69 = scmp.ne.s32.totalorder %s64, %s66
    %p70 = scmp.eq.s32.totalorder %s9, 0
    %p71 = por %p69, %p70
    %p72 = scmp.ne.s32.totalorder %s64, %s66
    %p73 = scmp.eq.s32.totalorder %s14, 1
    %p74 = por %p72, %p73
    %p75 = scmp.ne.s32.totalorder %s66, %s67
    %p76 = scmp.eq.s32.totalorder %s14, 0
    %p77 = por %p75, %p76
    %p78 = scmp.ne.s32.totalorder %s66, %s67
    %p79 = scmp.eq.s32.totalorder %s15, 1
    %p80 = por %p78, %p79
    %p82 = scmp.ne.s32.totalorder %s67, %s81
    %p83 = scmp.eq.s32.totalorder %s15, 0
    %p84 = por %p82, %p83
    %s85 = ssub.s32 %s9, %s16
    %p86 = scmp.eq.s32.totalorder %s85, 0
    %s88 = sadd.s32 %s87, 1
    %s89 = scalar_select %p86, %s87, %s88
    %p92 = pneg %p86
    %p93 = scmp.eq.s32.totalorder %s9, 1
    %p94 = por %p92, %p93
    %p95 = scmp.ne.s32.totalorder %s87, %s90
    %p96 = scmp.eq.s32.totalorder %s9, 0
    %p97 = por %p95, %p96
    %p98 = scmp.ne.s32.totalorder %s87, %s90
    %p99 = scmp.eq.s32.totalorder %s14, 1
    %p100 = por %p98, %p99
    %p101 = scmp.ne.s32.totalorder %s90, %s91
    %p102 = scmp.eq.s32.totalorder %s14, 0
    %p103 = por %p101, %p102
    %p104 = scmp.ne.s32.totalorder %s90, %s91
    %p105 = scmp.eq.s32.totalorder %s15, 1
    %p106 = por %p104, %p105
    %p108 = scmp.ne.s32.totalorder %s91, %s107
    %p109 = scmp.eq.s32.totalorder %s15, 0
    %p110 = por %p108, %p109
    %p111 = scmp.le.s32.totalorder 1, %s9
    %p112 = scmp.lt.s32.totalorder %s9, 3
    %p113 = pnand %p111, %p112
    %p114 = pneg %p113
    // Predicated region
    $region9: #{cnn_forward.4} parent=5 // pred_check
      _
    $region10: #{cnn_forward.4} parent=5 // pred_check_branch
      %116 = sbr.rel (%p113) target = $region12
    $region11: #{cnn_forward.4} parent=5 // pred_region
      %s117 = ssub.s32 %s9, 1
      // Predicated region
      $region13: #{cnn_forward.4} parent=11 // pred_check
        %p118 = pneg %p56
      $region14: #{cnn_forward.4} parent=11 // pred_check_branch
        %120 = sbr.rel (%p118) target = $region16
      $region15: #{cnn_forward.4} parent=11 // pred_region
        _
      $region16: #{cnn_forward.4} parent=11 // pred_fallthru
        _
      // Predicated region
      $region17: #{cnn_forward.4} parent=11 // pred_check
        %p121 = pneg %p77
      $region18: #{cnn_forward.4} parent=11 // pred_check_branch
        %123 = sbr.rel (%p121) target = $region20
      $region19: #{cnn_forward.4} parent=11 // pred_region
        _
      $region20: #{cnn_forward.4} parent=11 // pred_fallthru
        _
    $region12: #{cnn_forward.4} parent=5 // pred_fallthru
      _
    %p124 = scmp.lt.s32.totalorder %s9, 2
    // Predicated region
    $region21: #{cnn_forward.4} parent=5 // pred_check
      %p125 = pneg %p124
    $region22: #{cnn_forward.4} parent=5 // pred_check_branch
      %127 = sbr.rel (%p125) target = $region24
    $region23: #{cnn_forward.4} parent=5 // pred_region
      // Predicated region
      $region25: #{cnn_forward.4} parent=23 // pred_check
        %p128 = pneg %p29
      $region26: #{cnn_forward.4} parent=23 // pred_check_branch
        %130 = sbr.rel (%p128) target = $region28
      $region27: #{cnn_forward.4} parent=23 // pred_region
        %p131 = scmp.lt.s32.totalorder %s9, 1
        %s132 = scalar_select %p131, %s9, 1
        %s133 = smul.addr %s132, 32
        %s134 = smul.addr %s133, 8
        %s135 = scalar_lea.vmem %s0, %s134
      $region28: #{cnn_forward.4} parent=23 // pred_fallthru
        _
    $region24: #{cnn_forward.4} parent=5 // pred_fallthru
      _
    %p136 = scmp.le.s32.totalorder 1, %s9
    %p137 = scmp.lt.s32.totalorder %s9, 3
    %p138 = pnand %p136, %p137
    %p139 = pneg %p138
    // Predicated region
    $region29: #{cnn_forward.4} parent=5 // pred_check
      _
    $region30: #{cnn_forward.4} parent=5 // pred_check_branch
      %141 = sbr.rel (%p138) target = $region32
    $region31: #{cnn_forward.4} parent=5 // pred_region
      %s142 = ssub.s32 %s9, 1
      %p143 = scmp.lt.s32.totalorder %s14, 1
      %s144 = scalar_select %p143, %s14, 1
      %s145 = smul.addr %s144, 32
      %s146 = smul.addr %s145, 8
      %s147 = scalar_lea.vmem %s0, %s146
      %p148 = pneg %p35
      %p149 = pneg %p32
      %p150 = pneg %p56
      %p151 = pneg %p53
      %p152 = pneg %p77
      %p153 = pneg %p74
      %p154 = pneg %p103
      %p155 = pneg %p100
      %p156 = scmp.lt.s32.totalorder %s14, 1
      %s157 = scalar_select %p156, %s14, 1
      %s158 = smul.addr %s157, 4
      %s159 = smul.addr %s158, 8
      %s160 = scalar_lea.vmem %s3, %s159
      %p161 = scmp.lt.s32.totalorder %s14, 1
      %s162 = scalar_select %p161, %s14, 1
      %s163 = smul.addr %s162, 32
      %s164 = smul.addr %s163, 8
      %s165 = scalar_lea.vmem %s0, %s164
      %p166 = scmp.lt.s32.totalorder %s14, 1
      %s167 = scalar_select %p166, %s14, 1
      %s168 = smul.addr %s167, 4
      %s169 = smul.addr %s168, 8
      %s170 = scalar_lea.vmem %s3, %s169
      %v171 = vld [vmem:[%s1] sm:$0xff]
      %v172 = vld [vmem:[%s1 + $0x8] sm:$0xff]
      %v173 = vld [vmem:[%s1 + $0x10] sm:$0xff]
      %v174 = vld [vmem:[%s1 + $0x18] sm:$0xff]
      %v175 = vld [vmem:[%s1 + $0x20] sm:$0xff]
      %v176 = vld [vmem:[%s1 + $0x28] sm:$0xff]
      %v177 = vld [vmem:[%s1 + $0x30] sm:$0xff]
      %v178 = vld [vmem:[%s1 + $0x38] sm:$0xff]
      %v179 = vld [vmem:[%s1 + $0x40] sm:$0xff]
      %v180 = vld [vmem:[%s1 + $0x48] sm:$0xff]
      %v181 = vld [vmem:[%s1 + $0x50] sm:$0xff]
      %v182 = vld [vmem:[%s1 + $0x58] sm:$0xff]
      %v183 = vld [vmem:[%s1 + $0x60] sm:$0xff]
      %v184 = vld [vmem:[%s1 + $0x68] sm:$0xff]
      %v185 = vld [vmem:[%s1 + $0x70] sm:$0xff]
      %v186 = vld [vmem:[%s1 + $0x78] sm:$0xff]
      %v187 = vld [vmem:[%s1 + $0x80] sm:$0xff]
      %v188 = vld [vmem:[%s1 + $0x88] sm:$0xff]
      %v189 = vld [vmem:[%s165] sm:$0xff]
      %v190 = vld [vmem:[%s165 + $0x8] sm:$0xff]
      %v191 = vld [vmem:[%s165 + $0x10] sm:$0xff]
      %v192 = vld [vmem:[%s165 + $0x18] sm:$0xff]
      %v193 = vld [vmem:[%s165 + $0x20] sm:$0xff]
      %v194 = vld [vmem:[%s165 + $0x28] sm:$0xff]
      %v195 = vld [vmem:[%s165 + $0x30] sm:$0x1]
      %v196 = vld [vmem:[%s165 + $0x38] sm:$0x1]
      %vm197 = vcmask 130048
      %v199 = vsel %vm197, %v190, 0
      %v202 = vsel %vm197, %v192, 0
      %v205 = vsel %vm197, %v194, 0
      %v208 = vsel %vm197, %v196, 0
      %210 = vmatpush.msra.mxu0 %v186
      %211 = vmatpush.msra.mxu0 %v185
      %212 = vmatpush.msra.mxu0 %v184
      %213 = vmatpush.msra.mxu0 %v183
      %214 = vmatpush.msra.mxu0 %v182
      %215 = vmatpush.msra.mxu0 %v181
      %216 = vmatpush.msra.mxu0 %v180
      %217 = vmatpush.msra.mxu0 %v179
      %218 = vmatpush.msra.mxu0 %v178
      %219 = vmatpush.msra.mxu0 %v177
      %220 = vmatpush.msra.mxu0 %v176
      %221 = vmatpush.msra.mxu0 %v175
      %222 = vmatpush.msra.mxu0 %v174
      %223 = vmatpush.msra.mxu0 %v173
      %224 = vmatpush.msra.mxu0 %v172
      %225 = vmatpush.msra.mxu0 %v171
      %226 = vmatmul.f32.gmra.mxu0 %v189
      %v227 = vpop.f32.mrf.mxu0
      %v228 = vadd.f32 0.0, %v227
      %229 = vmatmul.f32.gmra.mxu0 %v191
      %v230 = vpop.f32.mrf.mxu0
      %v231 = vadd.f32 0.0, %v230
      %232 = vmatmul.f32.gmra.mxu0 %v193
      %v233 = vpop.f32.mrf.mxu0
      %v234 = vadd.f32 0.0, %v233
      %235 = vmatmul.f32.gmra.mxu0 %v195
      %v236 = vpop.f32.mrf.mxu0
      %v237 = vadd.f32 0.0, %v236
      %238 = vdwg.mxu0
      %239 = vmatpush.msra.mxu0 0.0
      %240 = vmatpush.msra.mxu0 0.0
      %241 = vmatpush.msra.mxu0 0.0
      %242 = vmatpush.msra.mxu0 0.0
      %243 = vmatpush.msra.mxu0 0.0
      %244 = vmatpush.msra.mxu0 0.0
      %245 = vmatpush.msra.mxu0 0.0
      %246 = vmatpush.msra.mxu0 0.0
      %247 = vmatpush.msra.mxu0 0.0
      %248 = vmatpush.msra.mxu0 0.0
      %249 = vmatpush.msra.mxu0 0.0
      %250 = vmatpush.msra.mxu0 0.0
      %251 = vmatpush.msra.mxu0 0.0
      %252 = vmatpush.msra.mxu0 0.0
      %253 = vmatpush.msra.mxu0 %v188
      %254 = vmatpush.msra.mxu0 %v187
      %255 = vmatmul.f32.gmra.mxu0 %v199
      %v256 = vpop.f32.mrf.mxu0
      %v257 = vadd.f32 %v228, %v256
      %258 = vmatmul.f32.gmra.mxu0 %v202
      %v259 = vpop.f32.mrf.mxu0
      %v260 = vadd.f32 %v231, %v259
      %261 = vmatmul.f32.gmra.mxu0 %v205
      %v262 = vpop.f32.mrf.mxu0
      %v263 = vadd.f32 %v234, %v262
      %264 = vmatmul.f32.gmra.mxu0 %v208
      %v265 = vpop.f32.mrf.mxu0
      %v266 = vadd.f32 %v237, %v265
      %267 = vdwg.mxu0
      %s268 = scalar_lea.vmem %s165, 64
      %v269 = vld [vmem:[%s268] sm:$0xff]
      %v270 = vld [vmem:[%s268 + $0x8] sm:$0xff]
      %v271 = vld [vmem:[%s268 + $0x10] sm:$0xff]
      %v272 = vld [vmem:[%s268 + $0x18] sm:$0xff]
      %v273 = vld [vmem:[%s268 + $0x20] sm:$0xff]
      %v274 = vld [vmem:[%s268 + $0x28] sm:$0xff]
      %v275 = vld [vmem:[%s268 + $0x30] sm:$0x1]
      %v276 = vld [vmem:[%s268 + $0x38] sm:$0x1]
      %v278 = vsel %vm197, %v270, 0
      %v281 = vsel %vm197, %v272, 0
      %v284 = vsel %vm197, %v274, 0
      %v287 = vsel %vm197, %v276, 0
      %289 = vmatpush.msra.mxu0 %v186
      %290 = vmatpush.msra.mxu0 %v185
      %291 = vmatpush.msra.mxu0 %v184
      %292 = vmatpush.msra.mxu0 %v183
      %293 = vmatpush.msra.mxu0 %v182
      %294 = vmatpush.msra.mxu0 %v181
      %295 = vmatpush.msra.mxu0 %v180
      %296 = vmatpush.msra.mxu0 %v179
      %297 = vmatpush.msra.mxu0 %v178
      %298 = vmatpush.msra.mxu0 %v177
      %299 = vmatpush.msra.mxu0 %v176
      %300 = vmatpush.msra.mxu0 %v175
      %301 = vmatpush.msra.mxu0 %v174
      %302 = vmatpush.msra.mxu0 %v173
      %303 = vmatpush.msra.mxu0 %v172
      %304 = vmatpush.msra.mxu0 %v171
      %305 = vmatmul.f32.gmra.mxu0 %v269
      %v306 = vpop.f32.mrf.mxu0
      %v307 = vadd.f32 0.0, %v306
      %308 = vmatmul.f32.gmra.mxu0 %v271
      %v309 = vpop.f32.mrf.mxu0
      %v310 = vadd.f32 0.0, %v309
      %311 = vmatmul.f32.gmra.mxu0 %v273
      %v312 = vpop.f32.mrf.mxu0
      %v313 = vadd.f32 0.0, %v312
      %314 = vmatmul.f32.gmra.mxu0 %v275
      %v315 = vpop.f32.mrf.mxu0
      %v316 = vadd.f32 0.0, %v315
      %317 = vdwg.mxu0
      %318 = vmatpush.msra.mxu0 0.0
      %319 = vmatpush.msra.mxu0 0.0
      %320 = vmatpush.msra.mxu0 0.0
      %321 = vmatpush.msra.mxu0 0.0
      %322 = vmatpush.msra.mxu0 0.0
      %323 = vmatpush.msra.mxu0 0.0
      %324 = vmatpush.msra.mxu0 0.0
      %325 = vmatpush.msra.mxu0 0.0
      %326 = vmatpush.msra.mxu0 0.0
      %327 = vmatpush.msra.mxu0 0.0
      %328 = vmatpush.msra.mxu0 0.0
      %329 = vmatpush.msra.mxu0 0.0
      %330 = vmatpush.msra.mxu0 0.0
      %331 = vmatpush.msra.mxu0 0.0
      %332 = vmatpush.msra.mxu0 %v188
      %333 = vmatpush.msra.mxu0 %v187
      %334 = vmatmul.f32.gmra.mxu0 %v278
      %v335 = vpop.f32.mrf.mxu0
      %v336 = vadd.f32 %v307, %v335
      %337 = vmatmul.f32.gmra.mxu0 %v281
      %v338 = vpop.f32.mrf.mxu0
      %v339 = vadd.f32 %v310, %v338
      %340 = vmatmul.f32.gmra.mxu0 %v284
      %v341 = vpop.f32.mrf.mxu0
      %v342 = vadd.f32 %v313, %v341
      %343 = vmatmul.f32.gmra.mxu0 %v287
      %v344 = vpop.f32.mrf.mxu0
      %v345 = vadd.f32 %v316, %v344
      %346 = vdwg.mxu0
      %v347 = vmax.f32 %v257, %v336
      %v348 = vmax.f32 %v260, %v339
      %v349 = vmax.f32 %v263, %v342
      %v350 = vmax.f32 %v266, %v345
      %s351 = scalar_lea.vmem %s165, 128
      %v352 = vld [vmem:[%s351] sm:$0xff]
      %v353 = vld [vmem:[%s351 + $0x8] sm:$0xff]
      %v354 = vld [vmem:[%s351 + $0x10] sm:$0xff]
      %v355 = vld [vmem:[%s351 + $0x18] sm:$0xff]
      %v356 = vld [vmem:[%s351 + $0x20] sm:$0xff]
      %v357 = vld [vmem:[%s351 + $0x28] sm:$0xff]
      %v358 = vld [vmem:[%s351 + $0x30] sm:$0x1]
      %v359 = vld [vmem:[%s351 + $0x38] sm:$0x1]
      %v361 = vsel %vm197, %v353, 0
      %v364 = vsel %vm197, %v355, 0
      %v367 = vsel %vm197, %v357, 0
      %v370 = vsel %vm197, %v359, 0
      %372 = vmatpush.msra.mxu0 %v186
      %373 = vmatpush.msra.mxu0 %v185
      %374 = vmatpush.msra.mxu0 %v184
      %375 = vmatpush.msra.mxu0 %v183
      %376 = vmatpush.msra.mxu0 %v182
      %377 = vmatpush.msra.mxu0 %v181
      %378 = vmatpush.msra.mxu0 %v180
      %379 = vmatpush.msra.mxu0 %v179
      %380 = vmatpush.msra.mxu0 %v178
      %381 = vmatpush.msra.mxu0 %v177
      %382 = vmatpush.msra.mxu0 %v176
      %383 = vmatpush.msra.mxu0 %v175
      %384 = vmatpush.msra.mxu0 %v174
      %385 = vmatpush.msra.mxu0 %v173
      %386 = vmatpush.msra.mxu0 %v172
      %387 = vmatpush.msra.mxu0 %v171
      %388 = vmatmul.f32.gmra.mxu0 %v352
      %v389 = vpop.f32.mrf.mxu0
      %v390 = vadd.f32 0.0, %v389
      %391 = vmatmul.f32.gmra.mxu0 %v354
      %v392 = vpop.f32.mrf.mxu0
      %v393 = vadd.f32 0.0, %v392
      %394 = vmatmul.f32.gmra.mxu0 %v356
      %v395 = vpop.f32.mrf.mxu0
      %v396 = vadd.f32 0.0, %v395
      %397 = vmatmul.f32.gmra.mxu0 %v358
      %v398 = vpop.f32.mrf.mxu0
      %v399 = vadd.f32 0.0, %v398
      %400 = vdwg.mxu0
      %401 = vmatpush.msra.mxu0 0.0
      %402 = vmatpush.msra.mxu0 0.0
      %403 = vmatpush.msra.mxu0 0.0
      %404 = vmatpush.msra.mxu0 0.0
      %405 = vmatpush.msra.mxu0 0.0
      %406 = vmatpush.msra.mxu0 0.0
      %407 = vmatpush.msra.mxu0 0.0
      %408 = vmatpush.msra.mxu0 0.0
      %409 = vmatpush.msra.mxu0 0.0
      %410 = vmatpush.msra.mxu0 0.0
      %411 = vmatpush.msra.mxu0 0.0
      %412 = vmatpush.msra.mxu0 0.0
      %413 = vmatpush.msra.mxu0 0.0
      %414 = vmatpush.msra.mxu0 0.0
      %415 = vmatpush.msra.mxu0 %v188
      %416 = vmatpush.msra.mxu0 %v187
      %417 = vmatmul.f32.gmra.mxu0 %v361
      %v418 = vpop.f32.mrf.mxu0
      %v419 = vadd.f32 %v390, %v418
      %420 = vmatmul.f32.gmra.mxu0 %v364
      %v421 = vpop.f32.mrf.mxu0
      %v422 = vadd.f32 %v393, %v421
      %423 = vmatmul.f32.gmra.mxu0 %v367
      %v424 = vpop.f32.mrf.mxu0
      %v425 = vadd.f32 %v396, %v424
      %426 = vmatmul.f32.gmra.mxu0 %v370
      %v427 = vpop.f32.mrf.mxu0
      %v428 = vadd.f32 %v399, %v427
      %429 = vdwg.mxu0
      %v430 = vmax.f32 %v347, %v419
      %v431 = vmax.f32 %v348, %v422
      %v432 = vmax.f32 %v349, %v425
      %v433 = vmax.f32 %v350, %v428
      %s434 = scalar_lea.vmem %s165, 192
      %v435 = vld [vmem:[%s434] sm:$0xff]
      %v436 = vld [vmem:[%s434 + $0x8] sm:$0xff]
      %v437 = vld [vmem:[%s434 + $0x10] sm:$0xff]
      %v438 = vld [vmem:[%s434 + $0x18] sm:$0xff]
      %v439 = vld [vmem:[%s434 + $0x20] sm:$0xff]
      %v440 = vld [vmem:[%s434 + $0x28] sm:$0xff]
      %v441 = vld [vmem:[%s434 + $0x30] sm:$0x1]
      %v442 = vld [vmem:[%s434 + $0x38] sm:$0x1]
      %v444 = vsel %vm197, %v436, 0
      %v447 = vsel %vm197, %v438, 0
      %v450 = vsel %vm197, %v440, 0
      %v453 = vsel %vm197, %v442, 0
      %455 = vmatpush.msra.mxu0 %v186
      %456 = vmatpush.msra.mxu0 %v185
      %457 = vmatpush.msra.mxu0 %v184
      %458 = vmatpush.msra.mxu0 %v183
      %459 = vmatpush.msra.mxu0 %v182
      %460 = vmatpush.msra.mxu0 %v181
      %461 = vmatpush.msra.mxu0 %v180
      %462 = vmatpush.msra.mxu0 %v179
      %463 = vmatpush.msra.mxu0 %v178
      %464 = vmatpush.msra.mxu0 %v177
      %465 = vmatpush.msra.mxu0 %v176
      %466 = vmatpush.msra.mxu0 %v175
      %467 = vmatpush.msra.mxu0 %v174
      %468 = vmatpush.msra.mxu0 %v173
      %469 = vmatpush.msra.mxu0 %v172
      %470 = vmatpush.msra.mxu0 %v171
      %471 = vmatmul.f32.gmra.mxu0 %v435
      %v472 = vpop.f32.mrf.mxu0
      %v473 = vadd.f32 0.0, %v472
      %474 = vmatmul.f32.gmra.mxu0 %v437
      %v475 = vpop.f32.mrf.mxu0
      %v476 = vadd.f32 0.0, %v475
      %477 = vmatmul.f32.gmra.mxu0 %v439
      %v478 = vpop.f32.mrf.mxu0
      %v479 = vadd.f32 0.0, %v478
      %480 = vmatmul.f32.gmra.mxu0 %v441
      %v481 = vpop.f32.mrf.mxu0
      %v482 = vadd.f32 0.0, %v481
      %483 = vdwg.mxu0
      %484 = vmatpush.msra.mxu0 0.0
      %485 = vmatpush.msra.mxu0 0.0
      %486 = vmatpush.msra.mxu0 0.0
      %487 = vmatpush.msra.mxu0 0.0
      %488 = vmatpush.msra.mxu0 0.0
      %489 = vmatpush.msra.mxu0 0.0
      %490 = vmatpush.msra.mxu0 0.0
      %491 = vmatpush.msra.mxu0 0.0
      %492 = vmatpush.msra.mxu0 0.0
      %493 = vmatpush.msra.mxu0 0.0
      %494 = vmatpush.msra.mxu0 0.0
      %495 = vmatpush.msra.mxu0 0.0
      %496 = vmatpush.msra.mxu0 0.0
      %497 = vmatpush.msra.mxu0 0.0
      %498 = vmatpush.msra.mxu0 %v188
      %499 = vmatpush.msra.mxu0 %v187
      %500 = vmatmul.f32.gmra.mxu0 %v444
      %v501 = vpop.f32.mrf.mxu0
      %v502 = vadd.f32 %v473, %v501
      %503 = vmatmul.f32.gmra.mxu0 %v447
      %v504 = vpop.f32.mrf.mxu0
      %v505 = vadd.f32 %v476, %v504
      %506 = vmatmul.f32.gmra.mxu0 %v450
      %v507 = vpop.f32.mrf.mxu0
      %v508 = vadd.f32 %v479, %v507
      %509 = vmatmul.f32.gmra.mxu0 %v453
      %v510 = vpop.f32.mrf.mxu0
      %v511 = vadd.f32 %v482, %v510
      %512 = vdwg.mxu0
      %v513 = vmax.f32 %v430, %v502
      %v514 = vmax.f32 %v431, %v505
      %v515 = vmax.f32 %v432, %v508
      %v516 = vmax.f32 %v433, %v511
      %v517 = vld [vmem:[%s2] sm:$0x1]
      %v519 = vperm.slane %v517, 0
      %v521 = vadd.f32 %v513, %v519
      %v522 = vadd.f32 %v514, %v519
      %v523 = vadd.f32 %v515, %v519
      %v524 = vadd.f32 %v516, %v519
      %v525 = vmax.f32 %v521, 0.0
      %v526 = vmax.f32 %v522, 0.0
      %v527 = vmax.f32 %v523, 0.0
      %v528 = vmax.f32 %v524, 0.0
      %529 = vst [vmem:[%s170] sm:$0xff] %v525
      %530 = vst [vmem:[%s170 + $0x8] sm:$0xff] %v526
      %531 = vst [vmem:[%s170 + $0x10] sm:$0xff] %v527
      %532 = vst [vmem:[%s170 + $0x18] sm:$0x1] %v528
      %p533 = scmp.lt.s32.totalorder %s14, 1
      %s534 = scalar_select %p533, %s14, 1
      %s535 = smul.addr %s534, 4
      %s536 = smul.addr %s535, 8
      %s537 = scalar_lea.vmem %s3, %s536
      // Predicated region
      $region33: #{cnn_forward.4} parent=31 // pred_check
        %p538 = pneg %p100
      $region34: #{cnn_forward.4} parent=31 // pred_check_branch
        %540 = sbr.rel (%p538) target = $region36
      $region35: #{cnn_forward.4} parent=31 // pred_region
        _
      $region36: #{cnn_forward.4} parent=31 // pred_fallthru
        _
    $region32: #{cnn_forward.4} parent=5 // pred_fallthru
      _
    %p541 = scmp.le.s32.totalorder 2, %s9
    // Predicated region
    $region37: #{cnn_forward.4} parent=5 // pred_check
      %p542 = pneg %p541
    $region38: #{cnn_forward.4} parent=5 // pred_check_branch
      %544 = sbr.rel (%p542) target = $region40
    $region39: #{cnn_forward.4} parent=5 // pred_region
      %s545 = ssub.s32 %s9, 2
      // Predicated region
      $region41: #{cnn_forward.4} parent=39 // pred_check
        %p546 = pneg %p106
      $region42: #{cnn_forward.4} parent=39 // pred_check_branch
        %548 = sbr.rel (%p546) target = $region44
      $region43: #{cnn_forward.4} parent=39 // pred_region
        %p549 = scmp.lt.s32.totalorder %s15, 1
        %s550 = scalar_select %p549, %s15, 1
        %s551 = smul.addr %s550, 4
        %s552 = smul.addr %s551, 8
        %s553 = scalar_lea.vmem %s3, %s552
      $region44: #{cnn_forward.4} parent=39 // pred_fallthru
        _
    $region40: #{cnn_forward.4} parent=5 // pred_fallthru
      _
  $region6: #{cnn_forward.4} parent=0 // loop_footer
    %s13 = sadd.s32 1, %s9
  $region7: #{cnn_forward.4} parent=0 // loop_footer_branch
    %8 = sbr.rel target = $region3
  $region8: #{cnn_forward.4} parent=0 // loop_exit
    _

// kernel: cnn_forward.5
$region0: #{cnn_forward.5}
  #allocation0 [shape = 'u32[]', space=smem, size = 0x4, offset = 0x4, fixed_abs, tag = 'smem constant byte address 0x4 - core index']
  #allocation1 [shape = 'u32[72,128]{1,0:T(1,128)}', space=vmem, size = 0x9000, scoped, tag = 'internal scratch']
  %s0 = inlined_call_operand.vmem [shape: f32[2,1600], index: 0, kind: input, shape index: {}]
  %s1 = inlined_call_operand.vmem [shape: f32[1600,128], index: 1, kind: input, shape index: {}]
  %s2 = inlined_call_operand.vmem [shape: f32[1,128], index: 2, kind: input, shape index: {}]
  %s3 = inlined_call_operand.vmem [shape: f32[128,128], index: 3, kind: input, shape index: {}]
  %s4 = inlined_call_operand.vmem [shape: f32[1,128], index: 4, kind: input, shape index: {}]
  %s5 = inlined_call_operand.vmem [shape: f32[128,128], index: 5, kind: input, shape index: {}]
  %s6 = inlined_call_operand.vmem [shape: f32[1,128], index: 6, kind: input, shape index: {}]
  %s7 = inlined_call_operand.hbm [shape: f32[2,128], index: 7, kind: output, shape index: {}]
  %s8 = sld [smem:[#allocation0]]
  $region38: #{cnn_forward.5} parent=0
    _
  %s10 = ssub.s32 1, %s8
  %s11 = scalar_select 0, %s10, %s8
  $region1: #{cnn_forward.5} parent=0
    #allocation2 [shape = 'u8[1024]{0}', space=vmem, size = 0x400, scoped, tag = 'output window, operand 0, single buffered']
    #allocation3 [shape = 's32[1]{0}', space=sflag, size = 0x4, scoped, tag = 'scoped memory for cnn_forward.5']
    %12 = vsyncpa [#allocation3], 0
    // Predicated region
    $region2: #{cnn_forward.5} parent=1 // pred_check
      _
    $region3: #{cnn_forward.5} parent=1 // pred_check_branch
      %14 = sbr.rel (0) target = $region5
    $region4: #{cnn_forward.5} parent=1 // pred_region
      _
    $region5: #{cnn_forward.5} parent=1 // pred_fallthru
      _
    // Predicated region
    $region6: #{cnn_forward.5} parent=1 // pred_check
      _
    $region7: #{cnn_forward.5} parent=1 // pred_check_branch
      %16 = sbr.rel (0) target = $region9
    $region8: #{cnn_forward.5} parent=1 // pred_region
      _
    $region9: #{cnn_forward.5} parent=1 // pred_fallthru
      _
    // Predicated region
    $region10: #{cnn_forward.5} parent=1 // pred_check
      _
    $region11: #{cnn_forward.5} parent=1 // pred_check_branch
      %18 = sbr.rel (0) target = $region13
    $region12: #{cnn_forward.5} parent=1 // pred_region
      _
    $region13: #{cnn_forward.5} parent=1 // pred_fallthru
      _
    // Predicated region
    $region14: #{cnn_forward.5} parent=1 // pred_check
      _
    $region15: #{cnn_forward.5} parent=1 // pred_check_branch
      %20 = sbr.rel (0) target = $region17
    $region16: #{cnn_forward.5} parent=1 // pred_region
      _
    $region17: #{cnn_forward.5} parent=1 // pred_fallthru
      _
    // Predicated region
    $region18: #{cnn_forward.5} parent=1 // pred_check
      _
    $region19: #{cnn_forward.5} parent=1 // pred_check_branch
      %22 = sbr.rel (0) target = $region21
    $region20: #{cnn_forward.5} parent=1 // pred_region
      _
    $region21: #{cnn_forward.5} parent=1 // pred_fallthru
      _
    // Predicated region
    $region22: #{cnn_forward.5} parent=1 // pred_check
      _
    $region23: #{cnn_forward.5} parent=1 // pred_check_branch
      %24 = sbr.rel (0) target = $region25
    $region24: #{cnn_forward.5} parent=1 // pred_region
      _
    $region25: #{cnn_forward.5} parent=1 // pred_fallthru
      _
    // Predicated region
    $region26: #{cnn_forward.5} parent=1 // pred_check
      _
    $region27: #{cnn_forward.5} parent=1 // pred_check_branch
      %26 = sbr.rel (0) target = $region29
    $region28: #{cnn_forward.5} parent=1 // pred_region
      _
    $region29: #{cnn_forward.5} parent=1 // pred_fallthru
      _
    %v27 = vld [vmem:[%s0] sm:$0xff]
    %v28 = vld [vmem:[%s0 + $0x8] sm:$0xff]
    %v29 = vld [vmem:[%s0 + $0x10] sm:$0xff]
    %v30 = vld [vmem:[%s0 + $0x18] sm:$0x3]
    %v31 = vld [vmem:[%s1] sm:$0xff]
    %v32 = vld [vmem:[%s1 + $0x8] sm:$0xff]
    %v33 = vld [vmem:[%s1 + $0x10] sm:$0xff]
    %v34 = vld [vmem:[%s1 + $0x18] sm:$0xff]
    %v35 = vld [vmem:[%s1 + $0x20] sm:$0xff]
    %v36 = vld [vmem:[%s1 + $0x28] sm:$0xff]
    %v37 = vld [vmem:[%s1 + $0x30] sm:$0xff]
    %v38 = vld [vmem:[%s1 + $0x38] sm:$0xff]
    %v39 = vld [vmem:[%s1 + $0x40] sm:$0xff]
    %v40 = vld [vmem:[%s1 + $0x48] sm:$0xff]
    %v41 = vld [vmem:[%s1 + $0x50] sm:$0xff]
    %v42 = vld [vmem:[%s1 + $0x58] sm:$0xff]
    %v43 = vld [vmem:[%s1 + $0x60] sm:$0xff]
    %v44 = vld [vmem:[%s1 + $0x68] sm:$0xff]
    %v45 = vld [vmem:[%s1 + $0x70] sm:$0xff]
    %v46 = vld [vmem:[%s1 + $0x78] sm:$0xff]
    %v47 = vld [vmem:[%s1 + $0x80] sm:$0xff]
    %v48 = vld [vmem:[%s1 + $0x88] sm:$0xff]
    %v49 = vld [vmem:[%s1 + $0x90] sm:$0xff]
    %v50 = vld [vmem:[%s1 + $0x98] sm:$0xff]
    %v51 = vld [vmem:[%s1 + $0xa0] sm:$0xff]
    %v52 = vld [vmem:[%s1 + $0xa8] sm:$0xff]
    %v53 = vld [vmem:[%s1 + $0xb0] sm:$0xff]
    %v54 = vld [vmem:[%s1 + $0xb8] sm:$0xff]
    %v55 = vld [vmem:[%s1 + $0xc0] sm:$0xff]
    %v56 = vld [vmem:[%s1 + $0xc8] sm:$0xff]
    %v57 = vld [vmem:[%s1 + $0xd0] sm:$0xff]
    %v58 = vld [vmem:[%s1 + $0xd8] sm:$0xff]
    %v59 = vld [vmem:[%s1 + $0xe0] sm:$0xff]
    %v60 = vld [vmem:[%s1 + $0xe8] sm:$0xff]
    %v61 = vld [vmem:[%s1 + $0xf0] sm:$0xff]
    %v62 = vld [vmem:[%s1 + $0xf8] sm:$0xff]
    %v63 = vld [vmem:[%s1 + $0x100] sm:$0xff]
    %v64 = vld [vmem:[%s1 + $0x108] sm:$0xff]
    %v65 = vld [vmem:[%s1 + $0x110] sm:$0xff]
    %v66 = vld [vmem:[%s1 + $0x118] sm:$0xff]
    %v67 = vld [vmem:[%s1 + $0x120] sm:$0xff]
    %v68 = vld [vmem:[%s1 + $0x128] sm:$0xff]
    %v69 = vld [vmem:[%s1 + $0x130] sm:$0xff]
    %v70 = vld [vmem:[%s1 + $0x138] sm:$0xff]
    %v71 = vld [vmem:[%s1 + $0x140] sm:$0xff]
    %v72 = vld [vmem:[%s1 + $0x148] sm:$0xff]
    %v73 = vld [vmem:[%s1 + $0x150] sm:$0xff]
    %v74 = vld [vmem:[%s1 + $0x158] sm:$0xff]
    %v75 = vld [vmem:[%s1 + $0x160] sm:$0xff]
    %v76 = vld [vmem:[%s1 + $0x168] sm:$0xff]
    %v77 = vld [vmem:[%s1 + $0x170] sm:$0xff]
    %v78 = vld [vmem:[%s1 + $0x178] sm:$0xff]
    %v79 = vld [vmem:[%s1 + $0x180] sm:$0xff]
    %v80 = vld [vmem:[%s1 + $0x188] sm:$0xff]
    %v81 = vld [vmem:[%s1 + $0x190] sm:$0xff]
    %v82 = vld [vmem:[%s1 + $0x198] sm:$0xff]
    %v83 = vld [vmem:[%s1 + $0x1a0] sm:$0xff]
    %v84 = vld [vmem:[%s1 + $0x1a8] sm:$0xff]
    %v85 = vld [vmem:[%s1 + $0x1b0] sm:$0xff]
    %v86 = vld [vmem:[%s1 + $0x1b8] sm:$0xff]
    %v87 = vld [vmem:[%s1 + $0x1c0] sm:$0xff]
    %v88 = vld [vmem:[%s1 + $0x1c8] sm:$0xff]
    %v89 = vld [vmem:[%s1 + $0x1d0] sm:$0xff]
    %v90 = vld [vmem:[%s1 + $0x1d8] sm:$0xff]
    %v91 = vld [vmem:[%s1 + $0x1e0] sm:$0xff]
    %v92 = vld [vmem:[%s1 + $0x1e8] sm:$0xff]
    %v93 = vld [vmem:[%s1 + $0x1f0] sm:$0xff]
    %v94 = vld [vmem:[%s1 + $0x1f8] sm:$0xff]
    %v95 = vld [vmem:[%s1 + $0x200] sm:$0xff]
    %v96 = vld [vmem:[%s1 + $0x208] sm:$0xff]
    %v97 = vld [vmem:[%s1 + $0x210] sm:$0xff]
    %v98 = vld [vmem:[%s1 + $0x218] sm:$0xff]
    %v99 = vld [vmem:[%s1 + $0x220] sm:$0xff]
    %v100 = vld [vmem:[%s1 + $0x228] sm:$0xff]
    %v101 = vld [vmem:[%s1 + $0x230] sm:$0xff]
    %v102 = vld [vmem:[%s1 + $0x238] sm:$0xff]
    %v103 = vld [vmem:[%s1 + $0x240] sm:$0xff]
    %v104 = vld [vmem:[%s1 + $0x248] sm:$0xff]
    %v105 = vld [vmem:[%s1 + $0x250] sm:$0xff]
    %v106 = vld [vmem:[%s1 + $0x258] sm:$0xff]
    %v107 = vld [vmem:[%s1 + $0x260] sm:$0xff]
    %v108 = vld [vmem:[%s1 + $0x268] sm:$0xff]
    %v109 = vld [vmem:[%s1 + $0x270] sm:$0xff]
    %v110 = vld [vmem:[%s1 + $0x278] sm:$0xff]
    %v111 = vld [vmem:[%s1 + $0x280] sm:$0xff]
    %v112 = vld [vmem:[%s1 + $0x288] sm:$0xff]
    %v113 = vld [vmem:[%s1 + $0x290] sm:$0xff]
    %v114 = vld [vmem:[%s1 + $0x298] sm:$0xff]
    %v115 = vld [vmem:[%s1 + $0x2a0] sm:$0xff]
    %v116 = vld [vmem:[%s1 + $0x2a8] sm:$0xff]
    %v117 = vld [vmem:[%s1 + $0x2b0] sm:$0xff]
    %v118 = vld [vmem:[%s1 + $0x2b8] sm:$0xff]
    %v119 = vld [vmem:[%s1 + $0x2c0] sm:$0xff]
    %v120 = vld [vmem:[%s1 + $0x2c8] sm:$0xff]
    %v121 = vld [vmem:[%s1 + $0x2d0] sm:$0xff]
    %v122 = vld [vmem:[%s1 + $0x2d8] sm:$0xff]
    %v123 = vld [vmem:[%s1 + $0x2e0] sm:$0xff]
    %v124 = vld [vmem:[%s1 + $0x2e8] sm:$0xff]
    %v125 = vld [vmem:[%s1 + $0x2f0] sm:$0xff]
    %v126 = vld [vmem:[%s1 + $0x2f8] sm:$0xff]
    %v127 = vld [vmem:[%s1 + $0x300] sm:$0xff]
    %v128 = vld [vmem:[%s1 + $0x308] sm:$0xff]
    %v129 = vld [vmem:[%s1 + $0x310] sm:$0xff]
    %v130 = vld [vmem:[%s1 + $0x318] sm:$0xff]
    %v131 = vld [vmem:[%s1 + $0x320] sm:$0xff]
    %v132 = vld [vmem:[%s1 + $0x328] sm:$0xff]
    %v133 = vld [vmem:[%s1 + $0x330] sm:$0xff]
    %v134 = vld [vmem:[%s1 + $0x338] sm:$0xff]
    %v135 = vld [vmem:[%s1 + $0x340] sm:$0xff]
    %v136 = vld [vmem:[%s1 + $0x348] sm:$0xff]
    %v137 = vld [vmem:[%s1 + $0x350] sm:$0xff]
    %v138 = vld [vmem:[%s1 + $0x358] sm:$0xff]
    %v139 = vld [vmem:[%s1 + $0x360] sm:$0xff]
    %v140 = vld [vmem:[%s1 + $0x368] sm:$0xff]
    %v141 = vld [vmem:[%s1 + $0x370] sm:$0xff]
    %v142 = vld [vmem:[%s1 + $0x378] sm:$0xff]
    %v143 = vld [vmem:[%s1 + $0x380] sm:$0xff]
    %v144 = vld [vmem:[%s1 + $0x388] sm:$0xff]
    %v145 = vld [vmem:[%s1 + $0x390] sm:$0xff]
    %v146 = vld [vmem:[%s1 + $0x398] sm:$0xff]
    %v147 = vld [vmem:[%s1 + $0x3a0] sm:$0xff]
    %v148 = vld [vmem:[%s1 + $0x3a8] sm:$0xff]
    %v149 = vld [vmem:[%s1 + $0x3b0] sm:$0xff]
    %v150 = vld [vmem:[%s1 + $0x3b8] sm:$0xff]
    %v151 = vld [vmem:[%s1 + $0x3c0] sm:$0xff]
    %v152 = vld [vmem:[%s1 + $0x3c8] sm:$0xff]
    %v153 = vld [vmem:[%s1 + $0x3d0] sm:$0xff]
    %v154 = vld [vmem:[%s1 + $0x3d8] sm:$0xff]
    %v155 = vld [vmem:[%s1 + $0x3e0] sm:$0xff]
    %v156 = vld [vmem:[%s1 + $0x3e8] sm:$0xff]
    %v157 = vld [vmem:[%s1 + $0x3f0] sm:$0xff]
    %v158 = vld [vmem:[%s1 + $0x3f8] sm:$0xff]
    %v159 = vld [vmem:[%s1 + $0x400] sm:$0xff]
    %v160 = vld [vmem:[%s1 + $0x408] sm:$0xff]
    %v161 = vld [vmem:[%s1 + $0x410] sm:$0xff]
    %v162 = vld [vmem:[%s1 + $0x418] sm:$0xff]
    %v163 = vld [vmem:[%s1 + $0x420] sm:$0xff]
    %v164 = vld [vmem:[%s1 + $0x428] sm:$0xff]
    %v165 = vld [vmem:[%s1 + $0x430] sm:$0xff]
    %v166 = vld [vmem:[%s1 + $0x438] sm:$0xff]
    %v167 = vld [vmem:[%s1 + $0x440] sm:$0xff]
    %v168 = vld [vmem:[%s1 + $0x448] sm:$0xff]
    %v169 = vld [vmem:[%s1 + $0x450] sm:$0xff]
    %v170 = vld [vmem:[%s1 + $0x458] sm:$0xff]
    %v171 = vld [vmem:[%s1 + $0x460] sm:$0xff]
    %v172 = vld [vmem:[%s1 + $0x468] sm:$0xff]
    %v173 = vld [vmem:[%s1 + $0x470] sm:$0xff]
    %v174 = vld [vmem:[%s1 + $0x478] sm:$0xff]
    %v175 = vld [vmem:[%s1 + $0x480] sm:$0xff]
    %v176 = vld [vmem:[%s1 + $0x488] sm:$0xff]
    %v177 = vld [vmem:[%s1 + $0x490] sm:$0xff]
    %v178 = vld [vmem:[%s1 + $0x498] sm:$0xff]
    %v179 = vld [vmem:[%s1 + $0x4a0] sm:$0xff]
    %v180 = vld [vmem:[%s1 + $0x4a8] sm:$0xff]
    %v181 = vld [vmem:[%s1 + $0x4b0] sm:$0xff]
    %v182 = vld [vmem:[%s1 + $0x4b8] sm:$0xff]
    %v183 = vld [vmem:[%s1 + $0x4c0] sm:$0xff]
    %v184 = vld [vmem:[%s1 + $0x4c8] sm:$0xff]
    %v185 = vld [vmem:[%s1 + $0x4d0] sm:$0xff]
    %v186 = vld [vmem:[%s1 + $0x4d8] sm:$0xff]
    %v187 = vld [vmem:[%s1 + $0x4e0] sm:$0xff]
    %v188 = vld [vmem:[%s1 + $0x4e8] sm:$0xff]
    %v189 = vld [vmem:[%s1 + $0x4f0] sm:$0xff]
    %v190 = vld [vmem:[%s1 + $0x4f8] sm:$0xff]
    %v191 = vld [vmem:[%s1 + $0x500] sm:$0xff]
    %v192 = vld [vmem:[%s1 + $0x508] sm:$0xff]
    %v193 = vld [vmem:[%s1 + $0x510] sm:$0xff]
    %v194 = vld [vmem:[%s1 + $0x518] sm:$0xff]
    %v195 = vld [vmem:[%s1 + $0x520] sm:$0xff]
    %v196 = vld [vmem:[%s1 + $0x528] sm:$0xff]
    %v197 = vld [vmem:[%s1 + $0x530] sm:$0xff]
    %v198 = vld [vmem:[%s1 + $0x538] sm:$0xff]
    %v199 = vld [vmem:[%s1 + $0x540] sm:$0xff]
    %v200 = vld [vmem:[%s1 + $0x548] sm:$0xff]
    %v201 = vld [vmem:[%s1 + $0x550] sm:$0xff]
    %v202 = vld [vmem:[%s1 + $0x558] sm:$0xff]
    %v203 = vld [vmem:[%s1 + $0x560] sm:$0xff]
    %v204 = vld [vmem:[%s1 + $0x568] sm:$0xff]
    %v205 = vld [vmem:[%s1 + $0x570] sm:$0xff]
    %v206 = vld [vmem:[%s1 + $0x578] sm:$0xff]
    %v207 = vld [vmem:[%s1 + $0x580] sm:$0xff]
    %v208 = vld [vmem:[%s1 + $0x588] sm:$0xff]
    %v209 = vld [vmem:[%s1 + $0x590] sm:$0xff]
    %v210 = vld [vmem:[%s1 + $0x598] sm:$0xff]
    %v211 = vld [vmem:[%s1 + $0x5a0] sm:$0xff]
    %v212 = vld [vmem:[%s1 + $0x5a8] sm:$0xff]
    %v213 = vld [vmem:[%s1 + $0x5b0] sm:$0xff]
    %v214 = vld [vmem:[%s1 + $0x5b8] sm:$0xff]
    %v215 = vld [vmem:[%s1 + $0x5c0] sm:$0xff]
    %v216 = vld [vmem:[%s1 + $0x5c8] sm:$0xff]
    %v217 = vld [vmem:[%s1 + $0x5d0] sm:$0xff]
    %v218 = vld [vmem:[%s1 + $0x5d8] sm:$0xff]
    %v219 = vld [vmem:[%s1 + $0x5e0] sm:$0xff]
    %v220 = vld [vmem:[%s1 + $0x5e8] sm:$0xff]
    %v221 = vld [vmem:[%s1 + $0x5f0] sm:$0xff]
    %v222 = vld [vmem:[%s1 + $0x5f8] sm:$0xff]
    %v223 = vld [vmem:[%s1 + $0x600] sm:$0xff]
    %v224 = vld [vmem:[%s1 + $0x608] sm:$0xff]
    %v225 = vld [vmem:[%s1 + $0x610] sm:$0xff]
    %v226 = vld [vmem:[%s1 + $0x618] sm:$0xff]
    %v227 = vld [vmem:[%s1 + $0x620] sm:$0xff]
    %v228 = vld [vmem:[%s1 + $0x628] sm:$0xff]
    %v229 = vld [vmem:[%s1 + $0x630] sm:$0xff]
    %v230 = vld [vmem:[%s1 + $0x638] sm:$0xff]
    %v231 = vld [vmem:[%s2] sm:$0x1]
    %v233 = vperm.slane %v231, 0
    %239 = vst [vmem:[#allocation1] ss:$4 sm:$0xff] %v27
    %s240 = scalar_lea.vmem [#allocation1], 32
    %241 = vst [vmem:[%s240] ss:$4 sm:$0xff] %v28
    %v242 = vld.sshfl [vmem:[#allocation1] sm:$0xff pattern:$0x73625140]
    %v243 = vld.sshfl [vmem:[#allocation1 + $0x8] sm:$0xff pattern:$0x73625140]
    %v244 = vld.sshfl [vmem:[#allocation1 + $0x10] sm:$0xff pattern:$0x73625140]
    %v245 = vld.sshfl [vmem:[#allocation1 + $0x18] sm:$0xff pattern:$0x73625140]
    %v246 = vld.sshfl [vmem:[#allocation1 + $0x20] sm:$0xff pattern:$0x73625140]
    %v247 = vld.sshfl [vmem:[#allocation1 + $0x28] sm:$0xff pattern:$0x73625140]
    %v248 = vld.sshfl [vmem:[#allocation1 + $0x30] sm:$0xff pattern:$0x73625140]
    %v249 = vld.sshfl [vmem:[#allocation1 + $0x38] sm:$0xff pattern:$0x73625140]
    %250 = vst [vmem:[#allocation1] ss:$4 sm:$0xff] %v29
    %251 = vst [vmem:[%s240] ss:$4 sm:$0xff] %v30
    %v252 = vld.sshfl [vmem:[#allocation1] sm:$0xff pattern:$0x73625140]
    %v253 = vld.sshfl [vmem:[#allocation1 + $0x8] sm:$0xff pattern:$0x73625140]
    %v254 = vld.sshfl [vmem:[#allocation1 + $0x10] sm:$0xff pattern:$0x73625140]
    %v255 = vld.sshfl [vmem:[#allocation1 + $0x18] sm:$0xff pattern:$0x73625140]
    %v256 = vld.sshfl [vmem:[#allocation1 + $0x20] sm:$0xff pattern:$0x73625140]
    %vm269 = vcmask 523264
    %v270 = vsel %vm269, %v256, 0
    %272 = vmatpush.msra.mxu0 %v46
    %273 = vmatpush.msra.mxu0 %v45
    %274 = vmatpush.msra.mxu0 %v44
    %275 = vmatpush.msra.mxu0 %v43
    %276 = vmatpush.msra.mxu0 %v42
    %277 = vmatpush.msra.mxu0 %v41
    %278 = vmatpush.msra.mxu0 %v40
    %279 = vmatpush.msra.mxu0 %v39
    %280 = vmatpush.msra.mxu0 %v38
    %281 = vmatpush.msra.mxu0 %v37
    %282 = vmatpush.msra.mxu0 %v36
    %283 = vmatpush.msra.mxu0 %v35
    %284 = vmatpush.msra.mxu0 %v34
    %285 = vmatpush.msra.mxu0 %v33
    %286 = vmatpush.msra.mxu0 %v32
    %287 = vmatpush.msra.mxu0 %v31
    %288 = vmatmul.f32.gmra.mxu0 %v242
    %v289 = vpop.f32.mrf.mxu0
    %v290 = vadd.f32 %v233, %v289
    %291 = vdwg.mxu0
    %292 = vmatpush.msra.mxu0 %v62
    %293 = vmatpush.msra.mxu0 %v61
    %294 = vmatpush.msra.mxu0 %v60
    %295 = vmatpush.msra.mxu0 %v59
    %296 = vmatpush.msra.mxu0 %v58
    %297 = vmatpush.msra.mxu0 %v57
    %298 = vmatpush.msra.mxu0 %v56
    %299 = vmatpush.msra.mxu0 %v55
    %300 = vmatpush.msra.mxu0 %v54
    %301 = vmatpush.msra.mxu0 %v53
    %302 = vmatpush.msra.mxu0 %v52
    %303 = vmatpush.msra.mxu0 %v51
    %304 = vmatpush.msra.mxu0 %v50
    %305 = vmatpush.msra.mxu0 %v49
    %306 = vmatpush.msra.mxu0 %v48
    %307 = vmatpush.msra.mxu0 %v47
    %308 = vmatmul.f32.gmra.mxu0 %v243
    %v309 = vpop.f32.mrf.mxu0
    %v310 = vadd.f32 %v290, %v309
    %311 = vdwg.mxu0
    %312 = vmatpush.msra.mxu0 %v78
    %313 = vmatpush.msra.mxu0 %v77
    %314 = vmatpush.msra.mxu0 %v76
    %315 = vmatpush.msra.mxu0 %v75
    %316 = vmatpush.msra.mxu0 %v74
    %317 = vmatpush.msra.mxu0 %v73
    %318 = vmatpush.msra.mxu0 %v72
    %319 = vmatpush.msra.mxu0 %v71
    %320 = vmatpush.msra.mxu0 %v70
    %321 = vmatpush.msra.mxu0 %v69
    %322 = vmatpush.msra.mxu0 %v68
    %323 = vmatpush.msra.mxu0 %v67
    %324 = vmatpush.msra.mxu0 %v66
    %325 = vmatpush.msra.mxu0 %v65
    %326 = vmatpush.msra.mxu0 %v64
    %327 = vmatpush.msra.mxu0 %v63
    %328 = vmatmul.f32.gmra.mxu0 %v244
    %v329 = vpop.f32.mrf.mxu0
    %v330 = vadd.f32 %v310, %v329
    %331 = vdwg.mxu0
    %332 = vmatpush.msra.mxu0 %v94
    %333 = vmatpush.msra.mxu0 %v93
    %334 = vmatpush.msra.mxu0 %v92
    %335 = vmatpush.msra.mxu0 %v91
    %336 = vmatpush.msra.mxu0 %v90
    %337 = vmatpush.msra.mxu0 %v89
    %338 = vmatpush.msra.mxu0 %v88
    %339 = vmatpush.msra.mxu0 %v87
    %340 = vmatpush.msra.mxu0 %v86
    %341 = vmatpush.msra.mxu0 %v85
    %342 = vmatpush.msra.mxu0 %v84
    %343 = vmatpush.msra.mxu0 %v83
    %344 = vmatpush.msra.mxu0 %v82
    %345 = vmatpush.msra.mxu0 %v81
    %346 = vmatpush.msra.mxu0 %v80
    %347 = vmatpush.msra.mxu0 %v79
    %348 = vmatmul.f32.gmra.mxu0 %v245
    %v349 = vpop.f32.mrf.mxu0
    %v350 = vadd.f32 %v330, %v349
    %351 = vdwg.mxu0
    %352 = vmatpush.msra.mxu0 %v110
    %353 = vmatpush.msra.mxu0 %v109
    %354 = vmatpush.msra.mxu0 %v108
    %355 = vmatpush.msra.mxu0 %v107
    %356 = vmatpush.msra.mxu0 %v106
    %357 = vmatpush.msra.mxu0 %v105
    %358 = vmatpush.msra.mxu0 %v104
    %359 = vmatpush.msra.mxu0 %v103
    %360 = vmatpush.msra.mxu0 %v102
    %361 = vmatpush.msra.mxu0 %v101
    %362 = vmatpush.msra.mxu0 %v100
    %363 = vmatpush.msra.mxu0 %v99
    %364 = vmatpush.msra.mxu0 %v98
    %365 = vmatpush.msra.mxu0 %v97
    %366 = vmatpush.msra.mxu0 %v96
    %367 = vmatpush.msra.mxu0 %v95
    %368 = vmatmul.f32.gmra.mxu0 %v246
    %v369 = vpop.f32.mrf.mxu0
    %v370 = vadd.f32 %v350, %v369
    %371 = vdwg.mxu0
    %372 = vmatpush.msra.mxu0 %v126
    %373 = vmatpush.msra.mxu0 %v125
    %374 = vmatpush.msra.mxu0 %v124
    %375 = vmatpush.msra.mxu0 %v123
    %376 = vmatpush.msra.mxu0 %v122
    %377 = vmatpush.msra.mxu0 %v121
    %378 = vmatpush.msra.mxu0 %v120
    %379 = vmatpush.msra.mxu0 %v119
    %380 = vmatpush.msra.mxu0 %v118
    %381 = vmatpush.msra.mxu0 %v117
    %382 = vmatpush.msra.mxu0 %v116
    %383 = vmatpush.msra.mxu0 %v115
    %384 = vmatpush.msra.mxu0 %v114
    %385 = vmatpush.msra.mxu0 %v113
    %386 = vmatpush.msra.mxu0 %v112
    %387 = vmatpush.msra.mxu0 %v111
    %388 = vmatmul.f32.gmra.mxu0 %v247
    %v389 = vpop.f32.mrf.mxu0
    %v390 = vadd.f32 %v370, %v389
    %391 = vdwg.mxu0
    %392 = vmatpush.msra.mxu0 %v142
    %393 = vmatpush.msra.mxu0 %v141
    %394 = vmatpush.msra.mxu0 %v140
    %395 = vmatpush.msra.mxu0 %v139
    %396 = vmatpush.msra.mxu0 %v138
    %397 = vmatpush.msra.mxu0 %v137
    %398 = vmatpush.msra.mxu0 %v136
    %399 = vmatpush.msra.mxu0 %v135
    %400 = vmatpush.msra.mxu0 %v134
    %401 = vmatpush.msra.mxu0 %v133
    %402 = vmatpush.msra.mxu0 %v132
    %403 = vmatpush.msra.mxu0 %v131
    %404 = vmatpush.msra.mxu0 %v130
    %405 = vmatpush.msra.mxu0 %v129
    %406 = vmatpush.msra.mxu0 %v128
    %407 = vmatpush.msra.mxu0 %v127
    %408 = vmatmul.f32.gmra.mxu0 %v248
    %v409 = vpop.f32.mrf.mxu0
    %v410 = vadd.f32 %v390, %v409
    %411 = vdwg.mxu0
    %412 = vmatpush.msra.mxu0 %v158
    %413 = vmatpush.msra.mxu0 %v157
    %414 = vmatpush.msra.mxu0 %v156
    %415 = vmatpush.msra.mxu0 %v155
    %416 = vmatpush.msra.mxu0 %v154
    %417 = vmatpush.msra.mxu0 %v153
    %418 = vmatpush.msra.mxu0 %v152
    %419 = vmatpush.msra.mxu0 %v151
    %420 = vmatpush.msra.mxu0 %v150
    %421 = vmatpush.msra.mxu0 %v149
    %422 = vmatpush.msra.mxu0 %v148
    %423 = vmatpush.msra.mxu0 %v147
    %424 = vmatpush.msra.mxu0 %v146
    %425 = vmatpush.msra.mxu0 %v145
    %426 = vmatpush.msra.mxu0 %v144
    %427 = vmatpush.msra.mxu0 %v143
    %428 = vmatmul.f32.gmra.mxu0 %v249
    %v429 = vpop.f32.mrf.mxu0
    %v430 = vadd.f32 %v410, %v429
    %431 = vdwg.mxu0
    %432 = vmatpush.msra.mxu0 %v174
    %433 = vmatpush.msra.mxu0 %v173
    %434 = vmatpush.msra.mxu0 %v172
    %435 = vmatpush.msra.mxu0 %v171
    %436 = vmatpush.msra.mxu0 %v170
    %437 = vmatpush.msra.mxu0 %v169
    %438 = vmatpush.msra.mxu0 %v168
    %439 = vmatpush.msra.mxu0 %v167
    %440 = vmatpush.msra.mxu0 %v166
    %441 = vmatpush.msra.mxu0 %v165
    %442 = vmatpush.msra.mxu0 %v164
    %443 = vmatpush.msra.mxu0 %v163
    %444 = vmatpush.msra.mxu0 %v162
    %445 = vmatpush.msra.mxu0 %v161
    %446 = vmatpush.msra.mxu0 %v160
    %447 = vmatpush.msra.mxu0 %v159
    %448 = vmatmul.f32.gmra.mxu0 %v252
    %v449 = vpop.f32.mrf.mxu0
    %v450 = vadd.f32 %v430, %v449
    %451 = vdwg.mxu0
    %452 = vmatpush.msra.mxu0 %v190
    %453 = vmatpush.msra.mxu0 %v189
    %454 = vmatpush.msra.mxu0 %v188
    %455 = vmatpush.msra.mxu0 %v187
    %456 = vmatpush.msra.mxu0 %v186
    %457 = vmatpush.msra.mxu0 %v185
    %458 = vmatpush.msra.mxu0 %v184
    %459 = vmatpush.msra.mxu0 %v183
    %460 = vmatpush.msra.mxu0 %v182
    %461 = vmatpush.msra.mxu0 %v181
    %462 = vmatpush.msra.mxu0 %v180
    %463 = vmatpush.msra.mxu0 %v179
    %464 = vmatpush.msra.mxu0 %v178
    %465 = vmatpush.msra.mxu0 %v177
    %466 = vmatpush.msra.mxu0 %v176
    %467 = vmatpush.msra.mxu0 %v175
    %468 = vmatmul.f32.gmra.mxu0 %v253
    %v469 = vpop.f32.mrf.mxu0
    %v470 = vadd.f32 %v450, %v469
    %471 = vdwg.mxu0
    %472 = vmatpush.msra.mxu0 %v206
    %473 = vmatpush.msra.mxu0 %v205
    %474 = vmatpush.msra.mxu0 %v204
    %475 = vmatpush.msra.mxu0 %v203
    %476 = vmatpush.msra.mxu0 %v202
    %477 = vmatpush.msra.mxu0 %v201
    %478 = vmatpush.msra.mxu0 %v200
    %479 = vmatpush.msra.mxu0 %v199
    %480 = vmatpush.msra.mxu0 %v198
    %481 = vmatpush.msra.mxu0 %v197
    %482 = vmatpush.msra.mxu0 %v196
    %483 = vmatpush.msra.mxu0 %v195
    %484 = vmatpush.msra.mxu0 %v194
    %485 = vmatpush.msra.mxu0 %v193
    %486 = vmatpush.msra.mxu0 %v192
    %487 = vmatpush.msra.mxu0 %v191
    %488 = vmatmul.f32.gmra.mxu0 %v254
    %v489 = vpop.f32.mrf.mxu0
    %v490 = vadd.f32 %v470, %v489
    %491 = vdwg.mxu0
    %492 = vmatpush.msra.mxu0 %v222
    %493 = vmatpush.msra.mxu0 %v221
    %494 = vmatpush.msra.mxu0 %v220
    %495 = vmatpush.msra.mxu0 %v219
    %496 = vmatpush.msra.mxu0 %v218
    %497 = vmatpush.msra.mxu0 %v217
    %498 = vmatpush.msra.mxu0 %v216
    %499 = vmatpush.msra.mxu0 %v215
    %500 = vmatpush.msra.mxu0 %v214
    %501 = vmatpush.msra.mxu0 %v213
    %502 = vmatpush.msra.mxu0 %v212
    %503 = vmatpush.msra.mxu0 %v211
    %504 = vmatpush.msra.mxu0 %v210
    %505 = vmatpush.msra.mxu0 %v209
    %506 = vmatpush.msra.mxu0 %v208
    %507 = vmatpush.msra.mxu0 %v207
    %508 = vmatmul.f32.gmra.mxu0 %v255
    %v509 = vpop.f32.mrf.mxu0
    %v510 = vadd.f32 %v490, %v509
    %511 = vdwg.mxu0
    %512 = vmatpush.msra.mxu0 0.0
    %513 = vmatpush.msra.mxu0 0.0
    %514 = vmatpush.msra.mxu0 0.0
    %515 = vmatpush.msra.mxu0 0.0
    %516 = vmatpush.msra.mxu0 0.0
    %517 = vmatpush.msra.mxu0 0.0
    %518 = vmatpush.msra.mxu0 0.0
    %519 = vmatpush.msra.mxu0 0.0
    %520 = vmatpush.msra.mxu0 %v230
    %521 = vmatpush.msra.mxu0 %v229
    %522 = vmatpush.msra.mxu0 %v228
    %523 = vmatpush.msra.mxu0 %v227
    %524 = vmatpush.msra.mxu0 %v226
    %525 = vmatpush.msra.mxu0 %v225
    %526 = vmatpush.msra.mxu0 %v224
    %527 = vmatpush.msra.mxu0 %v223
    %528 = vmatmul.f32.gmra.mxu0 %v270
    %v529 = vpop.f32.mrf.mxu0
    %v530 = vadd.f32 %v510, %v529
    %531 = vdwg.mxu0
    %v532 = vmax.f32 %v530, 0.0
    %v533 = vld [vmem:[%s3] sm:$0xff]
    %v534 = vld [vmem:[%s3 + $0x8] sm:$0xff]
    %v535 = vld [vmem:[%s3 + $0x10] sm:$0xff]
    %v536 = vld [vmem:[%s3 + $0x18] sm:$0xff]
    %v537 = vld [vmem:[%s3 + $0x20] sm:$0xff]
    %v538 = vld [vmem:[%s3 + $0x28] sm:$0xff]
    %v539 = vld [vmem:[%s3 + $0x30] sm:$0xff]
    %v540 = vld [vmem:[%s3 + $0x38] sm:$0xff]
    %v541 = vld [vmem:[%s3 + $0x40] sm:$0xff]
    %v542 = vld [vmem:[%s3 + $0x48] sm:$0xff]
    %v543 = vld [vmem:[%s3 + $0x50] sm:$0xff]
    %v544 = vld [vmem:[%s3 + $0x58] sm:$0xff]
    %v545 = vld [vmem:[%s3 + $0x60] sm:$0xff]
    %v546 = vld [vmem:[%s3 + $0x68] sm:$0xff]
    %v547 = vld [vmem:[%s3 + $0x70] sm:$0xff]
    %v548 = vld [vmem:[%s3 + $0x78] sm:$0xff]
    %v549 = vld [vmem:[%s4] sm:$0x1]
    %v551 = vperm.slane %v549, 0
    %553 = vmatpush.msra.mxu0 %v548
    %554 = vmatpush.msra.mxu0 %v547
    %555 = vmatpush.msra.mxu0 %v546
    %556 = vmatpush.msra.mxu0 %v545
    %557 = vmatpush.msra.mxu0 %v544
    %558 = vmatpush.msra.mxu0 %v543
    %559 = vmatpush.msra.mxu0 %v542
    %560 = vmatpush.msra.mxu0 %v541
    %561 = vmatpush.msra.mxu0 %v540
    %562 = vmatpush.msra.mxu0 %v539
    %563 = vmatpush.msra.mxu0 %v538
    %564 = vmatpush.msra.mxu0 %v537
    %565 = vmatpush.msra.mxu0 %v536
    %566 = vmatpush.msra.mxu0 %v535
    %567 = vmatpush.msra.mxu0 %v534
    %568 = vmatpush.msra.mxu0 %v533
    %569 = vmatmul.f32.gmra.mxu0 %v532
    %v570 = vpop.f32.mrf.mxu0
    %v571 = vadd.f32 %v551, %v570
    %572 = vdwg.mxu0
    %v573 = vmax.f32 %v571, 0.0
    %v574 = vld [vmem:[%s5] sm:$0xff]
    %v575 = vld [vmem:[%s5 + $0x8] sm:$0xff]
    %v576 = vld [vmem:[%s5 + $0x10] sm:$0xff]
    %v577 = vld [vmem:[%s5 + $0x18] sm:$0xff]
    %v578 = vld [vmem:[%s5 + $0x20] sm:$0xff]
    %v579 = vld [vmem:[%s5 + $0x28] sm:$0xff]
    %v580 = vld [vmem:[%s5 + $0x30] sm:$0xff]
    %v581 = vld [vmem:[%s5 + $0x38] sm:$0xff]
    %v582 = vld [vmem:[%s5 + $0x40] sm:$0xff]
    %v583 = vld [vmem:[%s5 + $0x48] sm:$0xff]
    %v584 = vld [vmem:[%s5 + $0x50] sm:$0xff]
    %v585 = vld [vmem:[%s5 + $0x58] sm:$0xff]
    %v586 = vld [vmem:[%s5 + $0x60] sm:$0xff]
    %v587 = vld [vmem:[%s5 + $0x68] sm:$0xff]
    %v588 = vld [vmem:[%s5 + $0x70] sm:$0xff]
    %v589 = vld [vmem:[%s5 + $0x78] sm:$0xff]
    %v590 = vld [vmem:[%s6] sm:$0x1]
    %v592 = vperm.slane %v590, 0
    %594 = vmatpush.msra.mxu0 %v589
    %595 = vmatpush.msra.mxu0 %v588
    %596 = vmatpush.msra.mxu0 %v587
    %597 = vmatpush.msra.mxu0 %v586
    %598 = vmatpush.msra.mxu0 %v585
    %599 = vmatpush.msra.mxu0 %v584
    %600 = vmatpush.msra.mxu0 %v583
    %601 = vmatpush.msra.mxu0 %v582
    %602 = vmatpush.msra.mxu0 %v581
    %603 = vmatpush.msra.mxu0 %v580
    %604 = vmatpush.msra.mxu0 %v579
    %605 = vmatpush.msra.mxu0 %v578
    %606 = vmatpush.msra.mxu0 %v577
    %607 = vmatpush.msra.mxu0 %v576
    %608 = vmatpush.msra.mxu0 %v575
    %609 = vmatpush.msra.mxu0 %v574
    %610 = vmatmul.f32.gmra.mxu0 %v573
    %v611 = vpop.f32.mrf.mxu0
    %v612 = vadd.f32 %v592, %v611
    %613 = vdwg.mxu0
    %614 = vst [vmem:[#allocation2] sm:$0x3] %v612
    // Predicated region
    $region30: #{cnn_forward.5} parent=1 // pred_check
      _
    $region31: #{cnn_forward.5} parent=1 // pred_check_branch
      %616 = sbr.rel (0) target = $region33
    $region32: #{cnn_forward.5} parent=1 // pred_region
      %618 = vsyncadd [#allocation3], 0
      %s620 = sshll.u32 [#allocation2], 4
      %s621 = int_to_ptr.vmem [resolvable:$true] %s620
      %s622 = sshll.u32 %s7, 4
      %s623 = int_to_ptr.hbm [resolvable:$true] %s622
      %625 = dma.vmem_to_hbm [thread:$0]  %s621, 32, %s623, [#allocation3]
    $region33: #{cnn_forward.5} parent=1 // pred_fallthru
      _
    // Predicated region
    $region34: #{cnn_forward.5} parent=1 // pred_check
      _
    $region35: #{cnn_forward.5} parent=1 // pred_check_branch
      %627 = sbr.rel (0) target = $region37
    $region36: #{cnn_forward.5} parent=1 // pred_region
      %629 = dma.done [#allocation3], 32
    $region37: #{cnn_forward.5} parent=1 // pred_fallthru
      _
    %630 = vsyncpa [#allocation3], 1

</llo_original>
